<compile_context>
chip_gen: v6e
topology: v6e:2x2x1
jax: 0.10.0
libtpu: 0.0.40
codegen_flags: <defaults>
</compile_context>

<pallas_src>
import functools

import jax
import jax.numpy as jnp
from jax.experimental import pallas as pl
from jax.experimental.pallas import tpu as pltpu

N_INPUT, N_OUTPUT, N_HIDDEN, N_LAYERS = 3, 5, 70, 8
IN_PAD, OUT_PAD, H_PAD = 8, 8, 128


def _round_up(x, m):
    return ((x + m - 1) // m) * m


def mlp_kernel(xt_ref, w0_ref, b0_ref, wh_ref, bh_ref, we_ref, be_ref, ot_ref):
    # First layer: [H_PAD, IN_PAD] @ [IN_PAD, TM] + [H_PAD, 1] -> tanh
    h = jnp.tanh(
        jnp.dot(w0_ref[...], xt_ref[...], preferred_element_type=jnp.float32)
        + b0_ref[...]
    )
    # Hidden layers (statically unrolled, traced once): [H_PAD, H_PAD] @ [H_PAD, TM]
    for l in range(N_LAYERS - 1):
        h = jnp.tanh(
            jnp.dot(wh_ref[l], h, preferred_element_type=jnp.float32)
            + bh_ref[l]
        )
    # Output layer: [OUT_PAD, H_PAD] @ [H_PAD, TM] + [OUT_PAD, 1] (lane-dense store)
    ot_ref[...] = (
        jnp.dot(we_ref[...], h, preferred_element_type=jnp.float32) + be_ref[...]
    ).astype(ot_ref.dtype)


def _pad_params(params):
    """Zero-pad PyTorch-native [out, in] weights to (8,128)-aligned shapes."""
    w0, b0, wh, bh, we, be = params
    f32 = jnp.float32
    w0p = jnp.zeros((H_PAD, IN_PAD), f32).at[:N_HIDDEN, :N_INPUT].set(w0)
    b0p = jnp.zeros((H_PAD, 1), f32).at[:N_HIDDEN, 0].set(b0)
    whp = jnp.zeros((N_LAYERS - 1, H_PAD, H_PAD), f32).at[:, :N_HIDDEN, :N_HIDDEN].set(wh)
    bhp = jnp.zeros((N_LAYERS - 1, H_PAD, 1), f32).at[:, :N_HIDDEN, 0].set(bh)
    wep = jnp.zeros((OUT_PAD, H_PAD), f32).at[:N_OUTPUT, :N_HIDDEN].set(we)
    bep = jnp.zeros((OUT_PAD, 1), f32).at[:N_OUTPUT, 0].set(be)
    return w0p, b0p, whp, bhp, wep, bep


@functools.partial(jax.jit, static_argnames=("tm",))
def ann_uv_forward(x, params, *, tm=512):
    """Forward pass of ANN_UvModel.  x: [N, 3] -> [N, 5].

    tm is the batch tile (rows per grid step); it is rounded up to a multiple
    of 128 (lane width).  Use multiples of 256 on v6e/v7x for full MXU fill.
    """
    n = x.shape[0]
    dtype = x.dtype
    w0p, b0p, whp, bhp, wep, bep = _pad_params(params)

    tm = _round_up(max(tm, 128), 128)
    tile = min(tm, _round_up(max(n, 1), 128))   # multiple of 128 by construction
    n_pad = _round_up(max(n, 1), tile)

    # Feature-major, zero-padded input slab: [IN_PAD, n_pad] (batch on lanes).
    xt = jnp.zeros((IN_PAD, n_pad), dtype).at[:N_INPUT, :n].set(x.T)

    grid = (n_pad // tile,)
    out_t = pl.pallas_call(
        mlp_kernel,
        out_shape=jax.ShapeDtypeStruct((OUT_PAD, n_pad), dtype),
        grid_spec=pltpu.PrefetchScalarGridSpec(
            num_scalar_prefetch=0,
            grid=grid,
            in_specs=[
                pl.BlockSpec((IN_PAD, tile), lambda i: (0, i)),
                pl.BlockSpec((H_PAD, IN_PAD), lambda i: (0, 0)),
                pl.BlockSpec((H_PAD, 1), lambda i: (0, 0)),
                pl.BlockSpec((N_LAYERS - 1, H_PAD, H_PAD), lambda i: (0, 0, 0)),
                pl.BlockSpec((N_LAYERS - 1, H_PAD, 1), lambda i: (0, 0, 0)),
                pl.BlockSpec((OUT_PAD, H_PAD), lambda i: (0, 0)),
                pl.BlockSpec((OUT_PAD, 1), lambda i: (0, 0)),
            ],
            out_specs=pl.BlockSpec((OUT_PAD, tile), lambda i: (0, i)),
        ),
        compiler_params=pltpu.CompilerParams(
            # Independent batch tiles -> megacore-shard across v7x's 2 TCs.
            dimension_semantics=("parallel",),
        ),
    )(xt, w0p, b0p, whp, bhp, wep, bep)

    # Back to batch-major [n, N_OUTPUT]; drop feature/batch padding.
    return out_t[:N_OUTPUT, :n].T


def init_params(key):
    # Matches nn.init.xavier_normal_ (std = sqrt(2/(fan_in+fan_out))), zero bias.
    # Weights kept in PyTorch-native [out, in] layout.
    keys = jax.random.split(key, N_LAYERS + 1)

    def xavier(k, fan_out, fan_in):
        std = (2.0 / (fan_in + fan_out)) ** 0.5
        return std * jax.random.normal(k, (fan_out, fan_in), jnp.float32)

    w0 = xavier(keys[0], N_HIDDEN, N_INPUT)                       # [70, 3]
    b0 = jnp.zeros((N_HIDDEN,), jnp.float32)
    wh = jnp.stack([xavier(keys[1 + l], N_HIDDEN, N_HIDDEN)
                    for l in range(N_LAYERS - 1)])                # [7, 70, 70]
    bh = jnp.zeros((N_LAYERS - 1, N_HIDDEN), jnp.float32)
    we = xavier(keys[N_LAYERS], N_OUTPUT, N_HIDDEN)               # [5, 70]
    be = jnp.zeros((N_OUTPUT,), jnp.float32)
    return w0, b0, wh, bh, we, be


def reference_forward(x, params):
    w0, b0, wh, bh, we, be = params
    h = jnp.tanh(x @ w0.T + b0)
    for l in range(N_LAYERS - 1):
        h = jnp.tanh(h @ wh[l].T + bh[l])
    return h @ we.T + be


if __name__ == "__main__":
    key = jax.random.PRNGKey(0)
    k_param, k_x = jax.random.split(key)
    params = init_params(k_param)

    # Small batch of (x, y, t) collocation points, consistent with N_INPUT=3.
    x = jax.random.normal(k_x, (16, N_INPUT), jnp.float32)
    out = jax.block_until_ready(ann_uv_forward(x, params))
    ref = reference_forward(x, params)
    assert out.shape == (16, N_OUTPUT)
    assert jnp.allclose(out, ref, atol=1e-4, rtol=1e-4)

    # Second size exercises wrapper-side batch padding (n not a tile multiple).
    x2 = jax.random.normal(jax.random.PRNGKey(1), (300, N_INPUT), jnp.float32)
    out2 = jax.block_until_ready(ann_uv_forward(x2, params))
    ref2 = reference_forward(x2, params)
    assert out2.shape == (300, N_OUTPUT)
    assert jnp.allclose(out2, ref2, atol=1e-4, rtol=1e-4)

    print("KERNEL_OK")
</pallas_src>

<mosaic_0001>
module attributes {stable_mosaic.version = 11 : i64} {
  func.func @mlp_kernel(%arg0: i32, %arg1: memref<8x128xf32, #tpu.memory_space<vmem>>, %arg2: memref<128x8xf32, #tpu.memory_space<vmem>>, %arg3: memref<128x1xf32, #tpu.memory_space<vmem>>, %arg4: memref<7x128x128xf32, #tpu.memory_space<vmem>>, %arg5: memref<7x128x1xf32, #tpu.memory_space<vmem>>, %arg6: memref<8x128xf32, #tpu.memory_space<vmem>>, %arg7: memref<8x1xf32, #tpu.memory_space<vmem>>, %arg8: memref<8x128xf32, #tpu.memory_space<vmem>>) attributes {dimension_semantics = [#tpu.dimension_semantics<parallel>], iteration_bounds = array<i64: 1>, scalar_prefetch = 0 : i64, scratch_operands = 0 : i64, tpu.core_type = #tpu.core_type<tc>, window_params = [{transform_indices = @transform_0, window_bounds = array<i64: 8, 128>}, {pipeline_mode = #tpu.pipeline_mode<synchronous>, transform_indices = @transform_1, window_bounds = array<i64: 128, 8>}, {pipeline_mode = #tpu.pipeline_mode<synchronous>, transform_indices = @transform_2, window_bounds = array<i64: 128, 1>}, {pipeline_mode = #tpu.pipeline_mode<synchronous>, transform_indices = @transform_3, window_bounds = array<i64: 7, 128, 128>}, {pipeline_mode = #tpu.pipeline_mode<synchronous>, transform_indices = @transform_4, window_bounds = array<i64: 7, 128, 1>}, {pipeline_mode = #tpu.pipeline_mode<synchronous>, transform_indices = @transform_5, window_bounds = array<i64: 8, 128>}, {pipeline_mode = #tpu.pipeline_mode<synchronous>, transform_indices = @transform_6, window_bounds = array<i64: 8, 1>}, {transform_indices = @transform_7, window_bounds = array<i64: 8, 128>}]} {
    %c0 = arith.constant 0 : index
    %c0_0 = arith.constant 0 : index
    %0 = vector.load %arg2[%c0, %c0_0] : memref<128x8xf32, #tpu.memory_space<vmem>>, vector<128x8xf32>
    %c0_1 = arith.constant 0 : index
    %c0_2 = arith.constant 0 : index
    %1 = vector.load %arg1[%c0_1, %c0_2] : memref<8x128xf32, #tpu.memory_space<vmem>>, vector<8x128xf32>
    %cst = arith.constant dense<0.000000e+00> : vector<128x128xf32>
    %2 = tpu.matmul %0, %1, %cst {dimension_numbers = #tpu.dot_dimension_numbers<[1], [0], [0], [1], [0, 0, 1, 1], [], []>} : vector<128x8xf32>, vector<8x128xf32>, vector<128x128xf32> -> vector<128x128xf32>
    %c0_3 = arith.constant 0 : index
    %c0_4 = arith.constant 0 : index
    %3 = vector.load %arg3[%c0_3, %c0_4] : memref<128x1xf32, #tpu.memory_space<vmem>>, vector<128x1xf32>
    %4 = vector.broadcast %3 : vector<128x1xf32> to vector<128x128xf32>
    %5 = arith.addf %2, %4 : vector<128x128xf32>
    %6 = math.tanh %5 : vector<128x128xf32>
    %c0_5 = arith.constant 0 : index
    %c0_6 = arith.constant 0 : index
    %c0_7 = arith.constant 0 : index
    %7 = vector.load %arg4[%c0_5, %c0_6, %c0_7] : memref<7x128x128xf32, #tpu.memory_space<vmem>>, vector<1x128x128xf32>
    %8 = vector.shape_cast %7 : vector<1x128x128xf32> to vector<128x128xf32>
    %cst_8 = arith.constant dense<0.000000e+00> : vector<128x128xf32>
    %9 = tpu.matmul %8, %6, %cst_8 {dimension_numbers = #tpu.dot_dimension_numbers<[1], [0], [0], [1], [0, 0, 1, 1], [], []>} : vector<128x128xf32>, vector<128x128xf32>, vector<128x128xf32> -> vector<128x128xf32>
    %c0_9 = arith.constant 0 : index
    %c0_10 = arith.constant 0 : index
    %c0_11 = arith.constant 0 : index
    %10 = vector.load %arg5[%c0_9, %c0_10, %c0_11] : memref<7x128x1xf32, #tpu.memory_space<vmem>>, vector<1x128x1xf32>
    %11 = vector.shape_cast %10 : vector<1x128x1xf32> to vector<128x1xf32>
    %12 = vector.broadcast %11 : vector<128x1xf32> to vector<128x128xf32>
    %13 = arith.addf %9, %12 : vector<128x128xf32>
    %14 = math.tanh %13 : vector<128x128xf32>
    %c1 = arith.constant 1 : index
    %c0_12 = arith.constant 0 : index
    %c0_13 = arith.constant 0 : index
    %15 = vector.load %arg4[%c1, %c0_12, %c0_13] : memref<7x128x128xf32, #tpu.memory_space<vmem>>, vector<1x128x128xf32>
    %16 = vector.shape_cast %15 : vector<1x128x128xf32> to vector<128x128xf32>
    %cst_14 = arith.constant dense<0.000000e+00> : vector<128x128xf32>
    %17 = tpu.matmul %16, %14, %cst_14 {dimension_numbers = #tpu.dot_dimension_numbers<[1], [0], [0], [1], [0, 0, 1, 1], [], []>} : vector<128x128xf32>, vector<128x128xf32>, vector<128x128xf32> -> vector<128x128xf32>
    %c1_15 = arith.constant 1 : index
    %c0_16 = arith.constant 0 : index
    %c0_17 = arith.constant 0 : index
    %18 = vector.load %arg5[%c1_15, %c0_16, %c0_17] : memref<7x128x1xf32, #tpu.memory_space<vmem>>, vector<1x128x1xf32>
    %19 = vector.shape_cast %18 : vector<1x128x1xf32> to vector<128x1xf32>
    %20 = vector.broadcast %19 : vector<128x1xf32> to vector<128x128xf32>
    %21 = arith.addf %17, %20 : vector<128x128xf32>
    %22 = math.tanh %21 : vector<128x128xf32>
    %c2 = arith.constant 2 : index
    %c0_18 = arith.constant 0 : index
    %c0_19 = arith.constant 0 : index
    %23 = vector.load %arg4[%c2, %c0_18, %c0_19] : memref<7x128x128xf32, #tpu.memory_space<vmem>>, vector<1x128x128xf32>
    %24 = vector.shape_cast %23 : vector<1x128x128xf32> to vector<128x128xf32>
    %cst_20 = arith.constant dense<0.000000e+00> : vector<128x128xf32>
    %25 = tpu.matmul %24, %22, %cst_20 {dimension_numbers = #tpu.dot_dimension_numbers<[1], [0], [0], [1], [0, 0, 1, 1], [], []>} : vector<128x128xf32>, vector<128x128xf32>, vector<128x128xf32> -> vector<128x128xf32>
    %c2_21 = arith.constant 2 : index
    %c0_22 = arith.constant 0 : index
    %c0_23 = arith.constant 0 : index
    %26 = vector.load %arg5[%c2_21, %c0_22, %c0_23] : memref<7x128x1xf32, #tpu.memory_space<vmem>>, vector<1x128x1xf32>
    %27 = vector.shape_cast %26 : vector<1x128x1xf32> to vector<128x1xf32>
    %28 = vector.broadcast %27 : vector<128x1xf32> to vector<128x128xf32>
    %29 = arith.addf %25, %28 : vector<128x128xf32>
    %30 = math.tanh %29 : vector<128x128xf32>
    %c3 = arith.constant 3 : index
    %c0_24 = arith.constant 0 : index
    %c0_25 = arith.constant 0 : index
    %31 = vector.load %arg4[%c3, %c0_24, %c0_25] : memref<7x128x128xf32, #tpu.memory_space<vmem>>, vector<1x128x128xf32>
    %32 = vector.shape_cast %31 : vector<1x128x128xf32> to vector<128x128xf32>
    %cst_26 = arith.constant dense<0.000000e+00> : vector<128x128xf32>
    %33 = tpu.matmul %32, %30, %cst_26 {dimension_numbers = #tpu.dot_dimension_numbers<[1], [0], [0], [1], [0, 0, 1, 1], [], []>} : vector<128x128xf32>, vector<128x128xf32>, vector<128x128xf32> -> vector<128x128xf32>
    %c3_27 = arith.constant 3 : index
    %c0_28 = arith.constant 0 : index
    %c0_29 = arith.constant 0 : index
    %34 = vector.load %arg5[%c3_27, %c0_28, %c0_29] : memref<7x128x1xf32, #tpu.memory_space<vmem>>, vector<1x128x1xf32>
    %35 = vector.shape_cast %34 : vector<1x128x1xf32> to vector<128x1xf32>
    %36 = vector.broadcast %35 : vector<128x1xf32> to vector<128x128xf32>
    %37 = arith.addf %33, %36 : vector<128x128xf32>
    %38 = math.tanh %37 : vector<128x128xf32>
    %c4 = arith.constant 4 : index
    %c0_30 = arith.constant 0 : index
    %c0_31 = arith.constant 0 : index
    %39 = vector.load %arg4[%c4, %c0_30, %c0_31] : memref<7x128x128xf32, #tpu.memory_space<vmem>>, vector<1x128x128xf32>
    %40 = vector.shape_cast %39 : vector<1x128x128xf32> to vector<128x128xf32>
    %cst_32 = arith.constant dense<0.000000e+00> : vector<128x128xf32>
    %41 = tpu.matmul %40, %38, %cst_32 {dimension_numbers = #tpu.dot_dimension_numbers<[1], [0], [0], [1], [0, 0, 1, 1], [], []>} : vector<128x128xf32>, vector<128x128xf32>, vector<128x128xf32> -> vector<128x128xf32>
    %c4_33 = arith.constant 4 : index
    %c0_34 = arith.constant 0 : index
    %c0_35 = arith.constant 0 : index
    %42 = vector.load %arg5[%c4_33, %c0_34, %c0_35] : memref<7x128x1xf32, #tpu.memory_space<vmem>>, vector<1x128x1xf32>
    %43 = vector.shape_cast %42 : vector<1x128x1xf32> to vector<128x1xf32>
    %44 = vector.broadcast %43 : vector<128x1xf32> to vector<128x128xf32>
    %45 = arith.addf %41, %44 : vector<128x128xf32>
    %46 = math.tanh %45 : vector<128x128xf32>
    %c5 = arith.constant 5 : index
    %c0_36 = arith.constant 0 : index
    %c0_37 = arith.constant 0 : index
    %47 = vector.load %arg4[%c5, %c0_36, %c0_37] : memref<7x128x128xf32, #tpu.memory_space<vmem>>, vector<1x128x128xf32>
    %48 = vector.shape_cast %47 : vector<1x128x128xf32> to vector<128x128xf32>
    %cst_38 = arith.constant dense<0.000000e+00> : vector<128x128xf32>
    %49 = tpu.matmul %48, %46, %cst_38 {dimension_numbers = #tpu.dot_dimension_numbers<[1], [0], [0], [1], [0, 0, 1, 1], [], []>} : vector<128x128xf32>, vector<128x128xf32>, vector<128x128xf32> -> vector<128x128xf32>
    %c5_39 = arith.constant 5 : index
    %c0_40 = arith.constant 0 : index
    %c0_41 = arith.constant 0 : index
    %50 = vector.load %arg5[%c5_39, %c0_40, %c0_41] : memref<7x128x1xf32, #tpu.memory_space<vmem>>, vector<1x128x1xf32>
    %51 = vector.shape_cast %50 : vector<1x128x1xf32> to vector<128x1xf32>
    %52 = vector.broadcast %51 : vector<128x1xf32> to vector<128x128xf32>
    %53 = arith.addf %49, %52 : vector<128x128xf32>
    %54 = math.tanh %53 : vector<128x128xf32>
    %c6 = arith.constant 6 : index
    %c0_42 = arith.constant 0 : index
    %c0_43 = arith.constant 0 : index
    %55 = vector.load %arg4[%c6, %c0_42, %c0_43] : memref<7x128x128xf32, #tpu.memory_space<vmem>>, vector<1x128x128xf32>
    %56 = vector.shape_cast %55 : vector<1x128x128xf32> to vector<128x128xf32>
    %cst_44 = arith.constant dense<0.000000e+00> : vector<128x128xf32>
    %57 = tpu.matmul %56, %54, %cst_44 {dimension_numbers = #tpu.dot_dimension_numbers<[1], [0], [0], [1], [0, 0, 1, 1], [], []>} : vector<128x128xf32>, vector<128x128xf32>, vector<128x128xf32> -> vector<128x128xf32>
    %c6_45 = arith.constant 6 : index
    %c0_46 = arith.constant 0 : index
    %c0_47 = arith.constant 0 : index
    %58 = vector.load %arg5[%c6_45, %c0_46, %c0_47] : memref<7x128x1xf32, #tpu.memory_space<vmem>>, vector<1x128x1xf32>
    %59 = vector.shape_cast %58 : vector<1x128x1xf32> to vector<128x1xf32>
    %60 = vector.broadcast %59 : vector<128x1xf32> to vector<128x128xf32>
    %61 = arith.addf %57, %60 : vector<128x128xf32>
    %62 = math.tanh %61 : vector<128x128xf32>
    %c0_48 = arith.constant 0 : index
    %c0_49 = arith.constant 0 : index
    %63 = vector.load %arg6[%c0_48, %c0_49] : memref<8x128xf32, #tpu.memory_space<vmem>>, vector<8x128xf32>
    %cst_50 = arith.constant dense<0.000000e+00> : vector<8x128xf32>
    %64 = tpu.matmul %63, %62, %cst_50 {dimension_numbers = #tpu.dot_dimension_numbers<[1], [0], [0], [1], [0, 0, 1, 1], [], []>} : vector<8x128xf32>, vector<128x128xf32>, vector<8x128xf32> -> vector<8x128xf32>
    %c0_51 = arith.constant 0 : index
    %c0_52 = arith.constant 0 : index
    %65 = vector.load %arg7[%c0_51, %c0_52] : memref<8x1xf32, #tpu.memory_space<vmem>>, vector<8x1xf32>
    %66 = vector.broadcast %65 : vector<8x1xf32> to vector<8x128xf32>
    %67 = arith.addf %64, %66 : vector<8x128xf32>
    %c0_53 = arith.constant 0 : index
    %c0_54 = arith.constant 0 : index
    %68 = vector.load %arg8[%c0_53, %c0_54] : memref<8x128xf32, #tpu.memory_space<vmem>>, vector<8x128xf32>
    tpu.vector_store %arg8[%c0_53, %c0_54], %67 {strides = array<i32>} : memref<8x128xf32, #tpu.memory_space<vmem>>, vector<8x128xf32>,
    return
  }
  func.func @transform_0(%arg0: i32) -> (i32, i32) {
    %c0_i32 = arith.constant 0 : i32
    %c0_i32_0 = arith.constant 0 : i32
    return %c0_i32, %arg0 : i32, i32
  }
  func.func @transform_1(%arg0: i32) -> (i32, i32) {
    %c0_i32 = arith.constant 0 : i32
    %c0_i32_0 = arith.constant 0 : i32
    %c0_i32_1 = arith.constant 0 : i32
    return %c0_i32, %c0_i32_0 : i32, i32
  }
  func.func @transform_2(%arg0: i32) -> (i32, i32) {
    %c0_i32 = arith.constant 0 : i32
    %c0_i32_0 = arith.constant 0 : i32
    %c0_i32_1 = arith.constant 0 : i32
    return %c0_i32, %c0_i32_0 : i32, i32
  }
  func.func @transform_3(%arg0: i32) -> (i32, i32, i32) {
    %c0_i32 = arith.constant 0 : i32
    %c0_i32_0 = arith.constant 0 : i32
    %c0_i32_1 = arith.constant 0 : i32
    %c0_i32_2 = arith.constant 0 : i32
    return %c0_i32, %c0_i32_0, %c0_i32_1 : i32, i32, i32
  }
  func.func @transform_4(%arg0: i32) -> (i32, i32, i32) {
    %c0_i32 = arith.constant 0 : i32
    %c0_i32_0 = arith.constant 0 : i32
    %c0_i32_1 = arith.constant 0 : i32
    %c0_i32_2 = arith.constant 0 : i32
    return %c0_i32, %c0_i32_0, %c0_i32_1 : i32, i32, i32
  }
  func.func @transform_5(%arg0: i32) -> (i32, i32) {
    %c0_i32 = arith.constant 0 : i32
    %c0_i32_0 = arith.constant 0 : i32
    %c0_i32_1 = arith.constant 0 : i32
    return %c0_i32, %c0_i32_0 : i32, i32
  }
  func.func @transform_6(%arg0: i32) -> (i32, i32) {
    %c0_i32 = arith.constant 0 : i32
    %c0_i32_0 = arith.constant 0 : i32
    %c0_i32_1 = arith.constant 0 : i32
    return %c0_i32, %c0_i32_0 : i32, i32
  }
  func.func @transform_7(%arg0: i32) -> (i32, i32) {
    %c0_i32 = arith.constant 0 : i32
    %c0_i32_0 = arith.constant 0 : i32
    return %c0_i32, %arg0 : i32, i32
  }
}

</mosaic_0001>

<llo_original>
// kernel: ann_uv_forward.1
$region0: #{ann_uv_forward.1}
  #allocation0 [shape = 'u32[]', space=smem, size = 0x4, offset = 0x4, fixed_abs, tag = 'smem constant byte address 0x4 - core index']
  #allocation1 [shape = 'u32[144,128]{1,0:T(1,128)}', space=vmem, size = 0x12000, scoped, tag = 'internal scratch']
  %s0 = inlined_call_operand.vmem [shape: f32[8,128], index: 0, kind: input, shape index: {}]
  %s1 = inlined_call_operand.vmem [shape: f32[128,8], index: 1, kind: input, shape index: {}]
  %s2 = inlined_call_operand.vmem [shape: f32[128,1], index: 2, kind: input, shape index: {}]
  %s3 = inlined_call_operand.vmem [shape: f32[7,128,128], index: 3, kind: input, shape index: {}]
  %s4 = inlined_call_operand.vmem [shape: f32[7,128,1], index: 4, kind: input, shape index: {}]
  %s5 = inlined_call_operand.vmem [shape: f32[8,128], index: 5, kind: input, shape index: {}]
  %s6 = inlined_call_operand.vmem [shape: f32[8,1], index: 6, kind: input, shape index: {}]
  %s7 = inlined_call_operand.vmem [shape: f32[8,128], index: 7, kind: output, shape index: {}]
  %s8 = sld [smem:[#allocation0]]
  $region38: #{ann_uv_forward.1} parent=0
    _
  %s10 = ssub.s32 1, %s8
  %s11 = scalar_select 0, %s10, %s8
  // Predicated region
  $region2: #{ann_uv_forward.1} parent=0 // pred_check
    _
  $region3: #{ann_uv_forward.1} parent=0 // pred_check_branch
    %13 = sbr.rel (0) target = $region5
  $region4: #{ann_uv_forward.1} parent=0 // pred_region
    _
  $region5: #{ann_uv_forward.1} parent=0 // pred_fallthru
    _
  // Predicated region
  $region6: #{ann_uv_forward.1} parent=0 // pred_check
    _
  $region7: #{ann_uv_forward.1} parent=0 // pred_check_branch
    %15 = sbr.rel (0) target = $region9
  $region8: #{ann_uv_forward.1} parent=0 // pred_region
    _
  $region9: #{ann_uv_forward.1} parent=0 // pred_fallthru
    _
  // Predicated region
  $region10: #{ann_uv_forward.1} parent=0 // pred_check
    _
  $region11: #{ann_uv_forward.1} parent=0 // pred_check_branch
    %17 = sbr.rel (0) target = $region13
  $region12: #{ann_uv_forward.1} parent=0 // pred_region
    _
  $region13: #{ann_uv_forward.1} parent=0 // pred_fallthru
    _
  // Predicated region
  $region14: #{ann_uv_forward.1} parent=0 // pred_check
    _
  $region15: #{ann_uv_forward.1} parent=0 // pred_check_branch
    %19 = sbr.rel (0) target = $region17
  $region16: #{ann_uv_forward.1} parent=0 // pred_region
    _
  $region17: #{ann_uv_forward.1} parent=0 // pred_fallthru
    _
  // Predicated region
  $region18: #{ann_uv_forward.1} parent=0 // pred_check
    _
  $region19: #{ann_uv_forward.1} parent=0 // pred_check_branch
    %21 = sbr.rel (0) target = $region21
  $region20: #{ann_uv_forward.1} parent=0 // pred_region
    _
  $region21: #{ann_uv_forward.1} parent=0 // pred_fallthru
    _
  // Predicated region
  $region22: #{ann_uv_forward.1} parent=0 // pred_check
    _
  $region23: #{ann_uv_forward.1} parent=0 // pred_check_branch
    %23 = sbr.rel (0) target = $region25
  $region24: #{ann_uv_forward.1} parent=0 // pred_region
    _
  $region25: #{ann_uv_forward.1} parent=0 // pred_fallthru
    _
  // Predicated region
  $region26: #{ann_uv_forward.1} parent=0 // pred_check
    _
  $region27: #{ann_uv_forward.1} parent=0 // pred_check_branch
    %25 = sbr.rel (0) target = $region29
  $region28: #{ann_uv_forward.1} parent=0 // pred_region
    _
  $region29: #{ann_uv_forward.1} parent=0 // pred_fallthru
    _
  %v26 = vld [vmem:[%s1] sm:$0xff]
  %v27 = vld [vmem:[%s1 + $0x8] sm:$0xff]
  %v28 = vld [vmem:[%s1 + $0x10] sm:$0xff]
  %v29 = vld [vmem:[%s1 + $0x18] sm:$0xff]
  %v30 = vld [vmem:[%s1 + $0x20] sm:$0xff]
  %v31 = vld [vmem:[%s1 + $0x28] sm:$0xff]
  %v32 = vld [vmem:[%s1 + $0x30] sm:$0xff]
  %v33 = vld [vmem:[%s1 + $0x38] sm:$0xff]
  %v34 = vld [vmem:[%s1 + $0x40] sm:$0xff]
  %v35 = vld [vmem:[%s1 + $0x48] sm:$0xff]
  %v36 = vld [vmem:[%s1 + $0x50] sm:$0xff]
  %v37 = vld [vmem:[%s1 + $0x58] sm:$0xff]
  %v38 = vld [vmem:[%s1 + $0x60] sm:$0xff]
  %v39 = vld [vmem:[%s1 + $0x68] sm:$0xff]
  %v40 = vld [vmem:[%s1 + $0x70] sm:$0xff]
  %v41 = vld [vmem:[%s1 + $0x78] sm:$0xff]
  %v42 = vld [vmem:[%s0] sm:$0xff]
  %v43 = vld [vmem:[%s2] sm:$0xff]
  %v44 = vld [vmem:[%s2 + $0x8] sm:$0xff]
  %v45 = vld [vmem:[%s2 + $0x10] sm:$0xff]
  %v46 = vld [vmem:[%s2 + $0x18] sm:$0xff]
  %v47 = vld [vmem:[%s2 + $0x20] sm:$0xff]
  %v48 = vld [vmem:[%s2 + $0x28] sm:$0xff]
  %v49 = vld [vmem:[%s2 + $0x30] sm:$0xff]
  %v50 = vld [vmem:[%s2 + $0x38] sm:$0xff]
  %v51 = vld [vmem:[%s2 + $0x40] sm:$0xff]
  %v52 = vld [vmem:[%s2 + $0x48] sm:$0xff]
  %v53 = vld [vmem:[%s2 + $0x50] sm:$0xff]
  %v54 = vld [vmem:[%s2 + $0x58] sm:$0xff]
  %v55 = vld [vmem:[%s2 + $0x60] sm:$0xff]
  %v56 = vld [vmem:[%s2 + $0x68] sm:$0xff]
  %v57 = vld [vmem:[%s2 + $0x70] sm:$0xff]
  %v58 = vld [vmem:[%s2 + $0x78] sm:$0xff]
  %60 = vset.pattern.permute.xlu0 0
  %61 = vperm.xlu0 %60, %v43
  %v62 = vpop.permute.xlu0 %61
  %65 = vset.pattern.permute.xlu0 0
  %66 = vperm.xlu0 %65, %v44
  %v67 = vpop.permute.xlu0 %66
  %70 = vset.pattern.permute.xlu0 0
  %71 = vperm.xlu0 %70, %v45
  %v72 = vpop.permute.xlu0 %71
  %75 = vset.pattern.permute.xlu0 0
  %76 = vperm.xlu0 %75, %v46
  %v77 = vpop.permute.xlu0 %76
  %80 = vset.pattern.permute.xlu0 0
  %81 = vperm.xlu0 %80, %v47
  %v82 = vpop.permute.xlu0 %81
  %85 = vset.pattern.permute.xlu0 0
  %86 = vperm.xlu0 %85, %v48
  %v87 = vpop.permute.xlu0 %86
  %90 = vset.pattern.permute.xlu0 0
  %91 = vperm.xlu0 %90, %v49
  %v92 = vpop.permute.xlu0 %91
  %95 = vset.pattern.permute.xlu0 0
  %96 = vperm.xlu0 %95, %v50
  %v97 = vpop.permute.xlu0 %96
  %100 = vset.pattern.permute.xlu0 0
  %101 = vperm.xlu0 %100, %v51
  %v102 = vpop.permute.xlu0 %101
  %105 = vset.pattern.permute.xlu0 0
  %106 = vperm.xlu0 %105, %v52
  %v107 = vpop.permute.xlu0 %106
  %110 = vset.pattern.permute.xlu0 0
  %111 = vperm.xlu0 %110, %v53
  %v112 = vpop.permute.xlu0 %111
  %115 = vset.pattern.permute.xlu0 0
  %116 = vperm.xlu0 %115, %v54
  %v117 = vpop.permute.xlu0 %116
  %120 = vset.pattern.permute.xlu0 0
  %121 = vperm.xlu0 %120, %v55
  %v122 = vpop.permute.xlu0 %121
  %125 = vset.pattern.permute.xlu0 0
  %126 = vperm.xlu0 %125, %v56
  %v127 = vpop.permute.xlu0 %126
  %130 = vset.pattern.permute.xlu0 0
  %131 = vperm.xlu0 %130, %v57
  %v132 = vpop.permute.xlu0 %131
  %135 = vset.pattern.permute.xlu0 0
  %136 = vperm.xlu0 %135, %v58
  %v137 = vpop.permute.xlu0 %136
  %vm139 = vcmask 64512
  %v141 = vsel %vm139, %v26, 0
  %v144 = vsel %vm139, %v27, 0
  %v147 = vsel %vm139, %v28, 0
  %v150 = vsel %vm139, %v29, 0
  %v153 = vsel %vm139, %v30, 0
  %v156 = vsel %vm139, %v31, 0
  %v159 = vsel %vm139, %v32, 0
  %v162 = vsel %vm139, %v33, 0
  %v165 = vsel %vm139, %v34, 0
  %v168 = vsel %vm139, %v35, 0
  %v171 = vsel %vm139, %v36, 0
  %v174 = vsel %vm139, %v37, 0
  %v177 = vsel %vm139, %v38, 0
  %v180 = vsel %vm139, %v39, 0
  %v183 = vsel %vm139, %v40, 0
  %v186 = vsel %vm139, %v41, 0
  %188 = vmatprep.subr.mxu0 0.0
  %189 = vmatpush1.msra.mxu0 0.0
  %190 = vmatprep.subr.mxu0 0.0
  %191 = vmatpush1.msra.mxu0 0.0
  %192 = vmatprep.subr.mxu0 0.0
  %193 = vmatpush1.msra.mxu0 0.0
  %194 = vmatprep.subr.mxu0 0.0
  %195 = vmatpush1.msra.mxu0 0.0
  %196 = vmatprep.subr.mxu0 0.0
  %197 = vmatpush1.msra.mxu0 0.0
  %198 = vmatprep.subr.mxu0 0.0
  %199 = vmatpush1.msra.mxu0 0.0
  %200 = vmatprep.subr.mxu0 0.0
  %201 = vmatpush1.msra.mxu0 0.0
  %202 = vmatprep.subr.mxu0 0.0
  %203 = vmatpush1.msra.mxu0 0.0
  %204 = vmatprep.subr.mxu0 0.0
  %205 = vmatpush1.msra.mxu0 0.0
  %206 = vmatprep.subr.mxu0 0.0
  %207 = vmatpush1.msra.mxu0 0.0
  %208 = vmatprep.subr.mxu0 0.0
  %209 = vmatpush1.msra.mxu0 0.0
  %210 = vmatprep.subr.mxu0 0.0
  %211 = vmatpush1.msra.mxu0 0.0
  %212 = vmatprep.subr.mxu0 0.0
  %213 = vmatpush1.msra.mxu0 0.0
  %214 = vmatprep.subr.mxu0 0.0
  %215 = vmatpush1.msra.mxu0 0.0
  %216 = vmatprep.subr.mxu0 0.0
  %217 = vmatpush1.msra.mxu0 0.0
  %218 = vmatprep.subr.mxu0 0.0
  %219 = vmatpush1.msra.mxu0 %v42
  %220 = vmatprep.subr.mxu0 0.0
  %221 = vmatpush2.msra.mxu0 0.0
  %222 = vmatprep.subr.mxu0 0.0
  %223 = vmatpush2.msra.mxu0 0.0
  %224 = vmatprep.subr.mxu0 0.0
  %225 = vmatpush2.msra.mxu0 0.0
  %226 = vmatprep.subr.mxu0 0.0
  %227 = vmatpush2.msra.mxu0 0.0
  %228 = vmatprep.subr.mxu0 0.0
  %229 = vmatpush2.msra.mxu0 0.0
  %230 = vmatprep.subr.mxu0 0.0
  %231 = vmatpush2.msra.mxu0 0.0
  %232 = vmatprep.subr.mxu0 0.0
  %233 = vmatpush2.msra.mxu0 0.0
  %234 = vmatprep.subr.mxu0 0.0
  %235 = vmatpush2.msra.mxu0 0.0
  %236 = vmatprep.subr.mxu0 0.0
  %237 = vmatpush2.msra.mxu0 0.0
  %238 = vmatprep.subr.mxu0 0.0
  %239 = vmatpush2.msra.mxu0 0.0
  %240 = vmatprep.subr.mxu0 0.0
  %241 = vmatpush2.msra.mxu0 0.0
  %242 = vmatprep.subr.mxu0 0.0
  %243 = vmatpush2.msra.mxu0 0.0
  %244 = vmatprep.subr.mxu0 0.0
  %245 = vmatpush2.msra.mxu0 0.0
  %246 = vmatprep.subr.mxu0 0.0
  %247 = vmatpush2.msra.mxu0 0.0
  %248 = vmatprep.subr.mxu0 0.0
  %249 = vmatpush2.msra.mxu0 0.0
  %250 = vmatprep.subr.mxu0 0.0
  %251 = vmatpush2.msra.mxu0 0.0
  %252 = vmatprep.mubr.f32.mxu0 0.0
  %253 = vmatmul.mubr.f32.gmra.mxu0 %v141
  %v254 = vpop.f32.mrf.mxu0
  %v255 = vadd.f32 %v62, %v254
  %v256 = vpop.f32.mrf.mxu0
  %257 = vmatprep.mubr.f32.mxu0 0.0
  %258 = vmatmul.mubr.f32.gmra.mxu0 %v144
  %v259 = vpop.f32.mrf.mxu0
  %v260 = vadd.f32 %v67, %v259
  %v261 = vpop.f32.mrf.mxu0
  %262 = vmatprep.mubr.f32.mxu0 0.0
  %263 = vmatmul.mubr.f32.gmra.mxu0 %v147
  %v264 = vpop.f32.mrf.mxu0
  %v265 = vadd.f32 %v72, %v264
  %v266 = vpop.f32.mrf.mxu0
  %267 = vmatprep.mubr.f32.mxu0 0.0
  %268 = vmatmul.mubr.f32.gmra.mxu0 %v150
  %v269 = vpop.f32.mrf.mxu0
  %v270 = vadd.f32 %v77, %v269
  %v271 = vpop.f32.mrf.mxu0
  %272 = vmatprep.mubr.f32.mxu0 0.0
  %273 = vmatmul.mubr.f32.gmra.mxu0 %v153
  %v274 = vpop.f32.mrf.mxu0
  %v275 = vadd.f32 %v82, %v274
  %v276 = vpop.f32.mrf.mxu0
  %277 = vmatprep.mubr.f32.mxu0 0.0
  %278 = vmatmul.mubr.f32.gmra.mxu0 %v156
  %v279 = vpop.f32.mrf.mxu0
  %v280 = vadd.f32 %v87, %v279
  %v281 = vpop.f32.mrf.mxu0
  %282 = vmatprep.mubr.f32.mxu0 0.0
  %283 = vmatmul.mubr.f32.gmra.mxu0 %v159
  %v284 = vpop.f32.mrf.mxu0
  %v285 = vadd.f32 %v92, %v284
  %v286 = vpop.f32.mrf.mxu0
  %287 = vmatprep.mubr.f32.mxu0 0.0
  %288 = vmatmul.mubr.f32.gmra.mxu0 %v162
  %v289 = vpop.f32.mrf.mxu0
  %v290 = vadd.f32 %v97, %v289
  %v291 = vpop.f32.mrf.mxu0
  %292 = vmatprep.mubr.f32.mxu0 0.0
  %293 = vmatmul.mubr.f32.gmra.mxu0 %v165
  %v294 = vpop.f32.mrf.mxu0
  %v295 = vadd.f32 %v102, %v294
  %v296 = vpop.f32.mrf.mxu0
  %297 = vmatprep.mubr.f32.mxu0 0.0
  %298 = vmatmul.mubr.f32.gmra.mxu0 %v168
  %v299 = vpop.f32.mrf.mxu0
  %v300 = vadd.f32 %v107, %v299
  %v301 = vpop.f32.mrf.mxu0
  %302 = vmatprep.mubr.f32.mxu0 0.0
  %303 = vmatmul.mubr.f32.gmra.mxu0 %v171
  %v304 = vpop.f32.mrf.mxu0
  %v305 = vadd.f32 %v112, %v304
  %v306 = vpop.f32.mrf.mxu0
  %307 = vmatprep.mubr.f32.mxu0 0.0
  %308 = vmatmul.mubr.f32.gmra.mxu0 %v174
  %v309 = vpop.f32.mrf.mxu0
  %v310 = vadd.f32 %v117, %v309
  %v311 = vpop.f32.mrf.mxu0
  %312 = vmatprep.mubr.f32.mxu0 0.0
  %313 = vmatmul.mubr.f32.gmra.mxu0 %v177
  %v314 = vpop.f32.mrf.mxu0
  %v315 = vadd.f32 %v122, %v314
  %v316 = vpop.f32.mrf.mxu0
  %317 = vmatprep.mubr.f32.mxu0 0.0
  %318 = vmatmul.mubr.f32.gmra.mxu0 %v180
  %v319 = vpop.f32.mrf.mxu0
  %v320 = vadd.f32 %v127, %v319
  %v321 = vpop.f32.mrf.mxu0
  %322 = vmatprep.mubr.f32.mxu0 0.0
  %323 = vmatmul.mubr.f32.gmra.mxu0 %v183
  %v324 = vpop.f32.mrf.mxu0
  %v325 = vadd.f32 %v132, %v324
  %v326 = vpop.f32.mrf.mxu0
  %327 = vmatprep.mubr.f32.mxu0 0.0
  %328 = vmatmul.mubr.f32.gmra.mxu0 %v186
  %v329 = vpop.f32.mrf.mxu0
  %v330 = vadd.f32 %v137, %v329
  %v331 = vpop.f32.mrf.mxu0
  %332 = vdwg.mxu0
  %v333 = vtanh.pop %v255
  %v334 = vtanh.pop %v260
  %v335 = vtanh.pop %v265
  %v336 = vtanh.pop %v270
  %v337 = vtanh.pop %v275
  %v338 = vtanh.pop %v280
  %v339 = vtanh.pop %v285
  %v340 = vtanh.pop %v290
  %v341 = vtanh.pop %v295
  %v342 = vtanh.pop %v300
  %v343 = vtanh.pop %v305
  %v344 = vtanh.pop %v310
  %v345 = vtanh.pop %v315
  %v346 = vtanh.pop %v320
  %v347 = vtanh.pop %v325
  %v348 = vtanh.pop %v330
  %v349 = vld [vmem:[%s3] sm:$0xff]
  %v350 = vld [vmem:[%s3 + $0x8] sm:$0xff]
  %v351 = vld [vmem:[%s3 + $0x10] sm:$0xff]
  %v352 = vld [vmem:[%s3 + $0x18] sm:$0xff]
  %v353 = vld [vmem:[%s3 + $0x20] sm:$0xff]
  %v354 = vld [vmem:[%s3 + $0x28] sm:$0xff]
  %v355 = vld [vmem:[%s3 + $0x30] sm:$0xff]
  %v356 = vld [vmem:[%s3 + $0x38] sm:$0xff]
  %v357 = vld [vmem:[%s3 + $0x40] sm:$0xff]
  %v358 = vld [vmem:[%s3 + $0x48] sm:$0xff]
  %v359 = vld [vmem:[%s3 + $0x50] sm:$0xff]
  %v360 = vld [vmem:[%s3 + $0x58] sm:$0xff]
  %v361 = vld [vmem:[%s3 + $0x60] sm:$0xff]
  %v362 = vld [vmem:[%s3 + $0x68] sm:$0xff]
  %v363 = vld [vmem:[%s3 + $0x70] sm:$0xff]
  %v364 = vld [vmem:[%s3 + $0x78] sm:$0xff]
  %v365 = vld [vmem:[%s4] sm:$0xff]
  %v366 = vld [vmem:[%s4 + $0x8] sm:$0xff]
  %v367 = vld [vmem:[%s4 + $0x10] sm:$0xff]
  %v368 = vld [vmem:[%s4 + $0x18] sm:$0xff]
  %v369 = vld [vmem:[%s4 + $0x20] sm:$0xff]
  %v370 = vld [vmem:[%s4 + $0x28] sm:$0xff]
  %v371 = vld [vmem:[%s4 + $0x30] sm:$0xff]
  %v372 = vld [vmem:[%s4 + $0x38] sm:$0xff]
  %v373 = vld [vmem:[%s4 + $0x40] sm:$0xff]
  %v374 = vld [vmem:[%s4 + $0x48] sm:$0xff]
  %v375 = vld [vmem:[%s4 + $0x50] sm:$0xff]
  %v376 = vld [vmem:[%s4 + $0x58] sm:$0xff]
  %v377 = vld [vmem:[%s4 + $0x60] sm:$0xff]
  %v378 = vld [vmem:[%s4 + $0x68] sm:$0xff]
  %v379 = vld [vmem:[%s4 + $0x70] sm:$0xff]
  %v380 = vld [vmem:[%s4 + $0x78] sm:$0xff]
  %382 = vset.pattern.permute.xlu0 0
  %383 = vperm.xlu0 %382, %v365
  %v384 = vpop.permute.xlu0 %383
  %387 = vset.pattern.permute.xlu0 0
  %388 = vperm.xlu0 %387, %v366
  %v389 = vpop.permute.xlu0 %388
  %392 = vset.pattern.permute.xlu0 0
  %393 = vperm.xlu0 %392, %v367
  %v394 = vpop.permute.xlu0 %393
  %397 = vset.pattern.permute.xlu0 0
  %398 = vperm.xlu0 %397, %v368
  %v399 = vpop.permute.xlu0 %398
  %402 = vset.pattern.permute.xlu0 0
  %403 = vperm.xlu0 %402, %v369
  %v404 = vpop.permute.xlu0 %403
  %407 = vset.pattern.permute.xlu0 0
  %408 = vperm.xlu0 %407, %v370
  %v409 = vpop.permute.xlu0 %408
  %412 = vset.pattern.permute.xlu0 0
  %413 = vperm.xlu0 %412, %v371
  %v414 = vpop.permute.xlu0 %413
  %417 = vset.pattern.permute.xlu0 0
  %418 = vperm.xlu0 %417, %v372
  %v419 = vpop.permute.xlu0 %418
  %422 = vset.pattern.permute.xlu0 0
  %423 = vperm.xlu0 %422, %v373
  %v424 = vpop.permute.xlu0 %423
  %427 = vset.pattern.permute.xlu0 0
  %428 = vperm.xlu0 %427, %v374
  %v429 = vpop.permute.xlu0 %428
  %432 = vset.pattern.permute.xlu0 0
  %433 = vperm.xlu0 %432, %v375
  %v434 = vpop.permute.xlu0 %433
  %437 = vset.pattern.permute.xlu0 0
  %438 = vperm.xlu0 %437, %v376
  %v439 = vpop.permute.xlu0 %438
  %442 = vset.pattern.permute.xlu0 0
  %443 = vperm.xlu0 %442, %v377
  %v444 = vpop.permute.xlu0 %443
  %447 = vset.pattern.permute.xlu0 0
  %448 = vperm.xlu0 %447, %v378
  %v449 = vpop.permute.xlu0 %448
  %452 = vset.pattern.permute.xlu0 0
  %453 = vperm.xlu0 %452, %v379
  %v454 = vpop.permute.xlu0 %453
  %457 = vset.pattern.permute.xlu0 0
  %458 = vperm.xlu0 %457, %v380
  %v459 = vpop.permute.xlu0 %458
  %461 = vmatprep.subr.mxu0 0.0
  %462 = vmatpush1.msra.mxu0 %v348
  %463 = vmatprep.subr.mxu0 0.0
  %464 = vmatpush1.msra.mxu0 %v347
  %465 = vmatprep.subr.mxu0 0.0
  %466 = vmatpush1.msra.mxu0 %v346
  %467 = vmatprep.subr.mxu0 0.0
  %468 = vmatpush1.msra.mxu0 %v345
  %469 = vmatprep.subr.mxu0 0.0
  %470 = vmatpush1.msra.mxu0 %v344
  %471 = vmatprep.subr.mxu0 0.0
  %472 = vmatpush1.msra.mxu0 %v343
  %473 = vmatprep.subr.mxu0 0.0
  %474 = vmatpush1.msra.mxu0 %v342
  %475 = vmatprep.subr.mxu0 0.0
  %476 = vmatpush1.msra.mxu0 %v341
  %477 = vmatprep.subr.mxu0 0.0
  %478 = vmatpush1.msra.mxu0 %v340
  %479 = vmatprep.subr.mxu0 0.0
  %480 = vmatpush1.msra.mxu0 %v339
  %481 = vmatprep.subr.mxu0 0.0
  %482 = vmatpush1.msra.mxu0 %v338
  %483 = vmatprep.subr.mxu0 0.0
  %484 = vmatpush1.msra.mxu0 %v337
  %485 = vmatprep.subr.mxu0 0.0
  %486 = vmatpush1.msra.mxu0 %v336
  %487 = vmatprep.subr.mxu0 0.0
  %488 = vmatpush1.msra.mxu0 %v335
  %489 = vmatprep.subr.mxu0 0.0
  %490 = vmatpush1.msra.mxu0 %v334
  %491 = vmatprep.subr.mxu0 0.0
  %492 = vmatpush1.msra.mxu0 %v333
  %493 = vmatprep.subr.mxu0 0.0
  %494 = vmatpush2.msra.mxu0 0.0
  %495 = vmatprep.subr.mxu0 0.0
  %496 = vmatpush2.msra.mxu0 0.0
  %497 = vmatprep.subr.mxu0 0.0
  %498 = vmatpush2.msra.mxu0 0.0
  %499 = vmatprep.subr.mxu0 0.0
  %500 = vmatpush2.msra.mxu0 0.0
  %501 = vmatprep.subr.mxu0 0.0
  %502 = vmatpush2.msra.mxu0 0.0
  %503 = vmatprep.subr.mxu0 0.0
  %504 = vmatpush2.msra.mxu0 0.0
  %505 = vmatprep.subr.mxu0 0.0
  %506 = vmatpush2.msra.mxu0 0.0
  %507 = vmatprep.subr.mxu0 0.0
  %508 = vmatpush2.msra.mxu0 0.0
  %509 = vmatprep.subr.mxu0 0.0
  %510 = vmatpush2.msra.mxu0 0.0
  %511 = vmatprep.subr.mxu0 0.0
  %512 = vmatpush2.msra.mxu0 0.0
  %513 = vmatprep.subr.mxu0 0.0
  %514 = vmatpush2.msra.mxu0 0.0
  %515 = vmatprep.subr.mxu0 0.0
  %516 = vmatpush2.msra.mxu0 0.0
  %517 = vmatprep.subr.mxu0 0.0
  %518 = vmatpush2.msra.mxu0 0.0
  %519 = vmatprep.subr.mxu0 0.0
  %520 = vmatpush2.msra.mxu0 0.0
  %521 = vmatprep.subr.mxu0 0.0
  %522 = vmatpush2.msra.mxu0 0.0
  %523 = vmatprep.subr.mxu0 0.0
  %524 = vmatpush2.msra.mxu0 0.0
  %525 = vmatprep.mubr.f32.mxu0 0.0
  %526 = vmatmul.mubr.f32.gmra.mxu0 %v349
  %v527 = vpop.f32.mrf.mxu0
  %v528 = vadd.f32 %v384, %v527
  %v529 = vpop.f32.mrf.mxu0
  %530 = vmatprep.mubr.f32.mxu0 0.0
  %531 = vmatmul.mubr.f32.gmra.mxu0 %v350
  %v532 = vpop.f32.mrf.mxu0
  %v533 = vadd.f32 %v389, %v532
  %v534 = vpop.f32.mrf.mxu0
  %535 = vmatprep.mubr.f32.mxu0 0.0
  %536 = vmatmul.mubr.f32.gmra.mxu0 %v351
  %v537 = vpop.f32.mrf.mxu0
  %v538 = vadd.f32 %v394, %v537
  %v539 = vpop.f32.mrf.mxu0
  %540 = vmatprep.mubr.f32.mxu0 0.0
  %541 = vmatmul.mubr.f32.gmra.mxu0 %v352
  %v542 = vpop.f32.mrf.mxu0
  %v543 = vadd.f32 %v399, %v542
  %v544 = vpop.f32.mrf.mxu0
  %545 = vmatprep.mubr.f32.mxu0 0.0
  %546 = vmatmul.mubr.f32.gmra.mxu0 %v353
  %v547 = vpop.f32.mrf.mxu0
  %v548 = vadd.f32 %v404, %v547
  %v549 = vpop.f32.mrf.mxu0
  %550 = vmatprep.mubr.f32.mxu0 0.0
  %551 = vmatmul.mubr.f32.gmra.mxu0 %v354
  %v552 = vpop.f32.mrf.mxu0
  %v553 = vadd.f32 %v409, %v552
  %v554 = vpop.f32.mrf.mxu0
  %555 = vmatprep.mubr.f32.mxu0 0.0
  %556 = vmatmul.mubr.f32.gmra.mxu0 %v355
  %v557 = vpop.f32.mrf.mxu0
  %v558 = vadd.f32 %v414, %v557
  %v559 = vpop.f32.mrf.mxu0
  %560 = vmatprep.mubr.f32.mxu0 0.0
  %561 = vmatmul.mubr.f32.gmra.mxu0 %v356
  %v562 = vpop.f32.mrf.mxu0
  %v563 = vadd.f32 %v419, %v562
  %v564 = vpop.f32.mrf.mxu0
  %565 = vmatprep.mubr.f32.mxu0 0.0
  %566 = vmatmul.mubr.f32.gmra.mxu0 %v357
  %v567 = vpop.f32.mrf.mxu0
  %v568 = vadd.f32 %v424, %v567
  %v569 = vpop.f32.mrf.mxu0
  %570 = vmatprep.mubr.f32.mxu0 0.0
  %571 = vmatmul.mubr.f32.gmra.mxu0 %v358
  %v572 = vpop.f32.mrf.mxu0
  %v573 = vadd.f32 %v429, %v572
  %v574 = vpop.f32.mrf.mxu0
  %575 = vmatprep.mubr.f32.mxu0 0.0
  %576 = vmatmul.mubr.f32.gmra.mxu0 %v359
  %v577 = vpop.f32.mrf.mxu0
  %v578 = vadd.f32 %v434, %v577
  %v579 = vpop.f32.mrf.mxu0
  %580 = vmatprep.mubr.f32.mxu0 0.0
  %581 = vmatmul.mubr.f32.gmra.mxu0 %v360
  %v582 = vpop.f32.mrf.mxu0
  %v583 = vadd.f32 %v439, %v582
  %v584 = vpop.f32.mrf.mxu0
  %585 = vmatprep.mubr.f32.mxu0 0.0
  %586 = vmatmul.mubr.f32.gmra.mxu0 %v361
  %v587 = vpop.f32.mrf.mxu0
  %v588 = vadd.f32 %v444, %v587
  %v589 = vpop.f32.mrf.mxu0
  %590 = vmatprep.mubr.f32.mxu0 0.0
  %591 = vmatmul.mubr.f32.gmra.mxu0 %v362
  %v592 = vpop.f32.mrf.mxu0
  %v593 = vadd.f32 %v449, %v592
  %v594 = vpop.f32.mrf.mxu0
  %595 = vmatprep.mubr.f32.mxu0 0.0
  %596 = vmatmul.mubr.f32.gmra.mxu0 %v363
  %v597 = vpop.f32.mrf.mxu0
  %v598 = vadd.f32 %v454, %v597
  %v599 = vpop.f32.mrf.mxu0
  %600 = vmatprep.mubr.f32.mxu0 0.0
  %601 = vmatmul.mubr.f32.gmra.mxu0 %v364
  %v602 = vpop.f32.mrf.mxu0
  %v603 = vadd.f32 %v459, %v602
  %v604 = vpop.f32.mrf.mxu0
  %605 = vdwg.mxu0
  %v606 = vtanh.pop %v528
  %v607 = vtanh.pop %v533
  %v608 = vtanh.pop %v538
  %v609 = vtanh.pop %v543
  %v610 = vtanh.pop %v548
  %v611 = vtanh.pop %v553
  %v612 = vtanh.pop %v558
  %v613 = vtanh.pop %v563
  %v614 = vtanh.pop %v568
  %v615 = vtanh.pop %v573
  %v616 = vtanh.pop %v578
  %v617 = vtanh.pop %v583
  %v618 = vtanh.pop %v588
  %v619 = vtanh.pop %v593
  %v620 = vtanh.pop %v598
  %v621 = vtanh.pop %v603
  %s622 = scalar_lea.vmem %s3, 128
  %v623 = vld [vmem:[%s622] sm:$0xff]
  %v624 = vld [vmem:[%s622 + $0x8] sm:$0xff]
  %v625 = vld [vmem:[%s622 + $0x10] sm:$0xff]
  %v626 = vld [vmem:[%s622 + $0x18] sm:$0xff]
  %v627 = vld [vmem:[%s622 + $0x20] sm:$0xff]
  %v628 = vld [vmem:[%s622 + $0x28] sm:$0xff]
  %v629 = vld [vmem:[%s622 + $0x30] sm:$0xff]
  %v630 = vld [vmem:[%s622 + $0x38] sm:$0xff]
  %v631 = vld [vmem:[%s622 + $0x40] sm:$0xff]
  %v632 = vld [vmem:[%s622 + $0x48] sm:$0xff]
  %v633 = vld [vmem:[%s622 + $0x50] sm:$0xff]
  %v634 = vld [vmem:[%s622 + $0x58] sm:$0xff]
  %v635 = vld [vmem:[%s622 + $0x60] sm:$0xff]
  %v636 = vld [vmem:[%s622 + $0x68] sm:$0xff]
  %v637 = vld [vmem:[%s622 + $0x70] sm:$0xff]
  %v638 = vld [vmem:[%s622 + $0x78] sm:$0xff]
  %s639 = scalar_lea.vmem %s4, 128
  %v640 = vld [vmem:[%s639] sm:$0xff]
  %v641 = vld [vmem:[%s639 + $0x8] sm:$0xff]
  %v642 = vld [vmem:[%s639 + $0x10] sm:$0xff]
  %v643 = vld [vmem:[%s639 + $0x18] sm:$0xff]
  %v644 = vld [vmem:[%s639 + $0x20] sm:$0xff]
  %v645 = vld [vmem:[%s639 + $0x28] sm:$0xff]
  %v646 = vld [vmem:[%s639 + $0x30] sm:$0xff]
  %v647 = vld [vmem:[%s639 + $0x38] sm:$0xff]
  %v648 = vld [vmem:[%s639 + $0x40] sm:$0xff]
  %v649 = vld [vmem:[%s639 + $0x48] sm:$0xff]
  %v650 = vld [vmem:[%s639 + $0x50] sm:$0xff]
  %v651 = vld [vmem:[%s639 + $0x58] sm:$0xff]
  %v652 = vld [vmem:[%s639 + $0x60] sm:$0xff]
  %v653 = vld [vmem:[%s639 + $0x68] sm:$0xff]
  %v654 = vld [vmem:[%s639 + $0x70] sm:$0xff]
  %v655 = vld [vmem:[%s639 + $0x78] sm:$0xff]
  %657 = vset.pattern.permute.xlu0 0
  %658 = vperm.xlu0 %657, %v640
  %v659 = vpop.permute.xlu0 %658
  %662 = vset.pattern.permute.xlu0 0
  %663 = vperm.xlu0 %662, %v641
  %v664 = vpop.permute.xlu0 %663
  %667 = vset.pattern.permute.xlu0 0
  %668 = vperm.xlu0 %667, %v642
  %v669 = vpop.permute.xlu0 %668
  %672 = vset.pattern.permute.xlu0 0
  %673 = vperm.xlu0 %672, %v643
  %v674 = vpop.permute.xlu0 %673
  %677 = vset.pattern.permute.xlu0 0
  %678 = vperm.xlu0 %677, %v644
  %v679 = vpop.permute.xlu0 %678
  %682 = vset.pattern.permute.xlu0 0
  %683 = vperm.xlu0 %682, %v645
  %v684 = vpop.permute.xlu0 %683
  %687 = vset.pattern.permute.xlu0 0
  %688 = vperm.xlu0 %687, %v646
  %v689 = vpop.permute.xlu0 %688
  %692 = vset.pattern.permute.xlu0 0
  %693 = vperm.xlu0 %692, %v647
  %v694 = vpop.permute.xlu0 %693
  %697 = vset.pattern.permute.xlu0 0
  %698 = vperm.xlu0 %697, %v648
  %v699 = vpop.permute.xlu0 %698
  %702 = vset.pattern.permute.xlu0 0
  %703 = vperm.xlu0 %702, %v649
  %v704 = vpop.permute.xlu0 %703
  %707 = vset.pattern.permute.xlu0 0
  %708 = vperm.xlu0 %707, %v650
  %v709 = vpop.permute.xlu0 %708
  %712 = vset.pattern.permute.xlu0 0
  %713 = vperm.xlu0 %712, %v651
  %v714 = vpop.permute.xlu0 %713
  %717 = vset.pattern.permute.xlu0 0
  %718 = vperm.xlu0 %717, %v652
  %v719 = vpop.permute.xlu0 %718
  %722 = vset.pattern.permute.xlu0 0
  %723 = vperm.xlu0 %722, %v653
  %v724 = vpop.permute.xlu0 %723
  %727 = vset.pattern.permute.xlu0 0
  %728 = vperm.xlu0 %727, %v654
  %v729 = vpop.permute.xlu0 %728
  %732 = vset.pattern.permute.xlu0 0
  %733 = vperm.xlu0 %732, %v655
  %v734 = vpop.permute.xlu0 %733
  %736 = vmatprep.subr.mxu0 0.0
  %737 = vmatpush1.msra.mxu0 %v621
  %738 = vmatprep.subr.mxu0 0.0
  %739 = vmatpush1.msra.mxu0 %v620
  %740 = vmatprep.subr.mxu0 0.0
  %741 = vmatpush1.msra.mxu0 %v619
  %742 = vmatprep.subr.mxu0 0.0
  %743 = vmatpush1.msra.mxu0 %v618
  %744 = vmatprep.subr.mxu0 0.0
  %745 = vmatpush1.msra.mxu0 %v617
  %746 = vmatprep.subr.mxu0 0.0
  %747 = vmatpush1.msra.mxu0 %v616
  %748 = vmatprep.subr.mxu0 0.0
  %749 = vmatpush1.msra.mxu0 %v615
  %750 = vmatprep.subr.mxu0 0.0
  %751 = vmatpush1.msra.mxu0 %v614
  %752 = vmatprep.subr.mxu0 0.0
  %753 = vmatpush1.msra.mxu0 %v613
  %754 = vmatprep.subr.mxu0 0.0
  %755 = vmatpush1.msra.mxu0 %v612
  %756 = vmatprep.subr.mxu0 0.0
  %757 = vmatpush1.msra.mxu0 %v611
  %758 = vmatprep.subr.mxu0 0.0
  %759 = vmatpush1.msra.mxu0 %v610
  %760 = vmatprep.subr.mxu0 0.0
  %761 = vmatpush1.msra.mxu0 %v609
  %762 = vmatprep.subr.mxu0 0.0
  %763 = vmatpush1.msra.mxu0 %v608
  %764 = vmatprep.subr.mxu0 0.0
  %765 = vmatpush1.msra.mxu0 %v607
  %766 = vmatprep.subr.mxu0 0.0
  %767 = vmatpush1.msra.mxu0 %v606
  %768 = vmatprep.subr.mxu0 0.0
  %769 = vmatpush2.msra.mxu0 0.0
  %770 = vmatprep.subr.mxu0 0.0
  %771 = vmatpush2.msra.mxu0 0.0
  %772 = vmatprep.subr.mxu0 0.0
  %773 = vmatpush2.msra.mxu0 0.0
  %774 = vmatprep.subr.mxu0 0.0
  %775 = vmatpush2.msra.mxu0 0.0
  %776 = vmatprep.subr.mxu0 0.0
  %777 = vmatpush2.msra.mxu0 0.0
  %778 = vmatprep.subr.mxu0 0.0
  %779 = vmatpush2.msra.mxu0 0.0
  %780 = vmatprep.subr.mxu0 0.0
  %781 = vmatpush2.msra.mxu0 0.0
  %782 = vmatprep.subr.mxu0 0.0
  %783 = vmatpush2.msra.mxu0 0.0
  %784 = vmatprep.subr.mxu0 0.0
  %785 = vmatpush2.msra.mxu0 0.0
  %786 = vmatprep.subr.mxu0 0.0
  %787 = vmatpush2.msra.mxu0 0.0
  %788 = vmatprep.subr.mxu0 0.0
  %789 = vmatpush2.msra.mxu0 0.0
  %790 = vmatprep.subr.mxu0 0.0
  %791 = vmatpush2.msra.mxu0 0.0
  %792 = vmatprep.subr.mxu0 0.0
  %793 = vmatpush2.msra.mxu0 0.0
  %794 = vmatprep.subr.mxu0 0.0
  %795 = vmatpush2.msra.mxu0 0.0
  %796 = vmatprep.subr.mxu0 0.0
  %797 = vmatpush2.msra.mxu0 0.0
  %798 = vmatprep.subr.mxu0 0.0
  %799 = vmatpush2.msra.mxu0 0.0
  %800 = vmatprep.mubr.f32.mxu0 0.0
  %801 = vmatmul.mubr.f32.gmra.mxu0 %v623
  %v802 = vpop.f32.mrf.mxu0
  %v803 = vadd.f32 %v659, %v802
  %v804 = vpop.f32.mrf.mxu0
  %805 = vmatprep.mubr.f32.mxu0 0.0
  %806 = vmatmul.mubr.f32.gmra.mxu0 %v624
  %v807 = vpop.f32.mrf.mxu0
  %v808 = vadd.f32 %v664, %v807
  %v809 = vpop.f32.mrf.mxu0
  %810 = vmatprep.mubr.f32.mxu0 0.0
  %811 = vmatmul.mubr.f32.gmra.mxu0 %v625
  %v812 = vpop.f32.mrf.mxu0
  %v813 = vadd.f32 %v669, %v812
  %v814 = vpop.f32.mrf.mxu0
  %815 = vmatprep.mubr.f32.mxu0 0.0
  %816 = vmatmul.mubr.f32.gmra.mxu0 %v626
  %v817 = vpop.f32.mrf.mxu0
  %v818 = vadd.f32 %v674, %v817
  %v819 = vpop.f32.mrf.mxu0
  %820 = vmatprep.mubr.f32.mxu0 0.0
  %821 = vmatmul.mubr.f32.gmra.mxu0 %v627
  %v822 = vpop.f32.mrf.mxu0
  %v823 = vadd.f32 %v679, %v822
  %v824 = vpop.f32.mrf.mxu0
  %825 = vmatprep.mubr.f32.mxu0 0.0
  %826 = vmatmul.mubr.f32.gmra.mxu0 %v628
  %v827 = vpop.f32.mrf.mxu0
  %v828 = vadd.f32 %v684, %v827
  %v829 = vpop.f32.mrf.mxu0
  %830 = vmatprep.mubr.f32.mxu0 0.0
  %831 = vmatmul.mubr.f32.gmra.mxu0 %v629
  %v832 = vpop.f32.mrf.mxu0
  %v833 = vadd.f32 %v689, %v832
  %v834 = vpop.f32.mrf.mxu0
  %835 = vmatprep.mubr.f32.mxu0 0.0
  %836 = vmatmul.mubr.f32.gmra.mxu0 %v630
  %v837 = vpop.f32.mrf.mxu0
  %v838 = vadd.f32 %v694, %v837
  %v839 = vpop.f32.mrf.mxu0
  %840 = vmatprep.mubr.f32.mxu0 0.0
  %841 = vmatmul.mubr.f32.gmra.mxu0 %v631
  %v842 = vpop.f32.mrf.mxu0
  %v843 = vadd.f32 %v699, %v842
  %v844 = vpop.f32.mrf.mxu0
  %845 = vmatprep.mubr.f32.mxu0 0.0
  %846 = vmatmul.mubr.f32.gmra.mxu0 %v632
  %v847 = vpop.f32.mrf.mxu0
  %v848 = vadd.f32 %v704, %v847
  %v849 = vpop.f32.mrf.mxu0
  %850 = vmatprep.mubr.f32.mxu0 0.0
  %851 = vmatmul.mubr.f32.gmra.mxu0 %v633
  %v852 = vpop.f32.mrf.mxu0
  %v853 = vadd.f32 %v709, %v852
  %v854 = vpop.f32.mrf.mxu0
  %855 = vmatprep.mubr.f32.mxu0 0.0
  %856 = vmatmul.mubr.f32.gmra.mxu0 %v634
  %v857 = vpop.f32.mrf.mxu0
  %v858 = vadd.f32 %v714, %v857
  %v859 = vpop.f32.mrf.mxu0
  %860 = vmatprep.mubr.f32.mxu0 0.0
  %861 = vmatmul.mubr.f32.gmra.mxu0 %v635
  %v862 = vpop.f32.mrf.mxu0
  %v863 = vadd.f32 %v719, %v862
  %v864 = vpop.f32.mrf.mxu0
  %865 = vmatprep.mubr.f32.mxu0 0.0
  %866 = vmatmul.mubr.f32.gmra.mxu0 %v636
  %v867 = vpop.f32.mrf.mxu0
  %v868 = vadd.f32 %v724, %v867
  %v869 = vpop.f32.mrf.mxu0
  %870 = vmatprep.mubr.f32.mxu0 0.0
  %871 = vmatmul.mubr.f32.gmra.mxu0 %v637
  %v872 = vpop.f32.mrf.mxu0
  %v873 = vadd.f32 %v729, %v872
  %v874 = vpop.f32.mrf.mxu0
  %875 = vmatprep.mubr.f32.mxu0 0.0
  %876 = vmatmul.mubr.f32.gmra.mxu0 %v638
  %v877 = vpop.f32.mrf.mxu0
  %v878 = vadd.f32 %v734, %v877
  %v879 = vpop.f32.mrf.mxu0
  %880 = vdwg.mxu0
  %v881 = vtanh.pop %v803
  %v882 = vtanh.pop %v808
  %v883 = vtanh.pop %v813
  %v884 = vtanh.pop %v818
  %v885 = vtanh.pop %v823
  %v886 = vtanh.pop %v828
  %v887 = vtanh.pop %v833
  %v888 = vtanh.pop %v838
  %v889 = vtanh.pop %v843
  %v890 = vtanh.pop %v848
  %v891 = vtanh.pop %v853
  %v892 = vtanh.pop %v858
  %v893 = vtanh.pop %v863
  %v894 = vtanh.pop %v868
  %v895 = vtanh.pop %v873
  %v896 = vtanh.pop %v878
  %s897 = scalar_lea.vmem %s3, 256
  %v898 = vld [vmem:[%s897] sm:$0xff]
  %v899 = vld [vmem:[%s897 + $0x8] sm:$0xff]
  %v900 = vld [vmem:[%s897 + $0x10] sm:$0xff]
  %v901 = vld [vmem:[%s897 + $0x18] sm:$0xff]
  %v902 = vld [vmem:[%s897 + $0x20] sm:$0xff]
  %v903 = vld [vmem:[%s897 + $0x28] sm:$0xff]
  %v904 = vld [vmem:[%s897 + $0x30] sm:$0xff]
  %v905 = vld [vmem:[%s897 + $0x38] sm:$0xff]
  %v906 = vld [vmem:[%s897 + $0x40] sm:$0xff]
  %v907 = vld [vmem:[%s897 + $0x48] sm:$0xff]
  %v908 = vld [vmem:[%s897 + $0x50] sm:$0xff]
  %v909 = vld [vmem:[%s897 + $0x58] sm:$0xff]
  %v910 = vld [vmem:[%s897 + $0x60] sm:$0xff]
  %v911 = vld [vmem:[%s897 + $0x68] sm:$0xff]
  %v912 = vld [vmem:[%s897 + $0x70] sm:$0xff]
  %v913 = vld [vmem:[%s897 + $0x78] sm:$0xff]
  %s914 = scalar_lea.vmem %s4, 256
  %v915 = vld [vmem:[%s914] sm:$0xff]
  %v916 = vld [vmem:[%s914 + $0x8] sm:$0xff]
  %v917 = vld [vmem:[%s914 + $0x10] sm:$0xff]
  %v918 = vld [vmem:[%s914 + $0x18] sm:$0xff]
  %v919 = vld [vmem:[%s914 + $0x20] sm:$0xff]
  %v920 = vld [vmem:[%s914 + $0x28] sm:$0xff]
  %v921 = vld [vmem:[%s914 + $0x30] sm:$0xff]
  %v922 = vld [vmem:[%s914 + $0x38] sm:$0xff]
  %v923 = vld [vmem:[%s914 + $0x40] sm:$0xff]
  %v924 = vld [vmem:[%s914 + $0x48] sm:$0xff]
  %v925 = vld [vmem:[%s914 + $0x50] sm:$0xff]
  %v926 = vld [vmem:[%s914 + $0x58] sm:$0xff]
  %v927 = vld [vmem:[%s914 + $0x60] sm:$0xff]
  %v928 = vld [vmem:[%s914 + $0x68] sm:$0xff]
  %v929 = vld [vmem:[%s914 + $0x70] sm:$0xff]
  %v930 = vld [vmem:[%s914 + $0x78] sm:$0xff]
  %932 = vset.pattern.permute.xlu0 0
  %933 = vperm.xlu0 %932, %v915
  %v934 = vpop.permute.xlu0 %933
  %937 = vset.pattern.permute.xlu0 0
  %938 = vperm.xlu0 %937, %v916
  %v939 = vpop.permute.xlu0 %938
  %942 = vset.pattern.permute.xlu0 0
  %943 = vperm.xlu0 %942, %v917
  %v944 = vpop.permute.xlu0 %943
  %947 = vset.pattern.permute.xlu0 0
  %948 = vperm.xlu0 %947, %v918
  %v949 = vpop.permute.xlu0 %948
  %952 = vset.pattern.permute.xlu0 0
  %953 = vperm.xlu0 %952, %v919
  %v954 = vpop.permute.xlu0 %953
  %957 = vset.pattern.permute.xlu0 0
  %958 = vperm.xlu0 %957, %v920
  %v959 = vpop.permute.xlu0 %958
  %962 = vset.pattern.permute.xlu0 0
  %963 = vperm.xlu0 %962, %v921
  %v964 = vpop.permute.xlu0 %963
  %967 = vset.pattern.permute.xlu0 0
  %968 = vperm.xlu0 %967, %v922
  %v969 = vpop.permute.xlu0 %968
  %972 = vset.pattern.permute.xlu0 0
  %973 = vperm.xlu0 %972, %v923
  %v974 = vpop.permute.xlu0 %973
  %977 = vset.pattern.permute.xlu0 0
  %978 = vperm.xlu0 %977, %v924
  %v979 = vpop.permute.xlu0 %978
  %982 = vset.pattern.permute.xlu0 0
  %983 = vperm.xlu0 %982, %v925
  %v984 = vpop.permute.xlu0 %983
  %987 = vset.pattern.permute.xlu0 0
  %988 = vperm.xlu0 %987, %v926
  %v989 = vpop.permute.xlu0 %988
  %992 = vset.pattern.permute.xlu0 0
  %993 = vperm.xlu0 %992, %v927
  %v994 = vpop.permute.xlu0 %993
  %997 = vset.pattern.permute.xlu0 0
  %998 = vperm.xlu0 %997, %v928
  %v999 = vpop.permute.xlu0 %998
  %1002 = vset.pattern.permute.xlu0 0
  %1003 = vperm.xlu0 %1002, %v929
  %v1004 = vpop.permute.xlu0 %1003
  %1007 = vset.pattern.permute.xlu0 0
  %1008 = vperm.xlu0 %1007, %v930
  %v1009 = vpop.permute.xlu0 %1008
  %1011 = vmatprep.subr.mxu0 0.0
  %1012 = vmatpush1.msra.mxu0 %v896
  %1013 = vmatprep.subr.mxu0 0.0
  %1014 = vmatpush1.msra.mxu0 %v895
  %1015 = vmatprep.subr.mxu0 0.0
  %1016 = vmatpush1.msra.mxu0 %v894
  %1017 = vmatprep.subr.mxu0 0.0
  %1018 = vmatpush1.msra.mxu0 %v893
  %1019 = vmatprep.subr.mxu0 0.0
  %1020 = vmatpush1.msra.mxu0 %v892
  %1021 = vmatprep.subr.mxu0 0.0
  %1022 = vmatpush1.msra.mxu0 %v891
  %1023 = vmatprep.subr.mxu0 0.0
  %1024 = vmatpush1.msra.mxu0 %v890
  %1025 = vmatprep.subr.mxu0 0.0
  %1026 = vmatpush1.msra.mxu0 %v889
  %1027 = vmatprep.subr.mxu0 0.0
  %1028 = vmatpush1.msra.mxu0 %v888
  %1029 = vmatprep.subr.mxu0 0.0
  %1030 = vmatpush1.msra.mxu0 %v887
  %1031 = vmatprep.subr.mxu0 0.0
  %1032 = vmatpush1.msra.mxu0 %v886
  %1033 = vmatprep.subr.mxu0 0.0
  %1034 = vmatpush1.msra.mxu0 %v885
  %1035 = vmatprep.subr.mxu0 0.0
  %1036 = vmatpush1.msra.mxu0 %v884
  %1037 = vmatprep.subr.mxu0 0.0
  %1038 = vmatpush1.msra.mxu0 %v883
  %1039 = vmatprep.subr.mxu0 0.0
  %1040 = vmatpush1.msra.mxu0 %v882
  %1041 = vmatprep.subr.mxu0 0.0
  %1042 = vmatpush1.msra.mxu0 %v881
  %1043 = vmatprep.subr.mxu0 0.0
  %1044 = vmatpush2.msra.mxu0 0.0
  %1045 = vmatprep.subr.mxu0 0.0
  %1046 = vmatpush2.msra.mxu0 0.0
  %1047 = vmatprep.subr.mxu0 0.0
  %1048 = vmatpush2.msra.mxu0 0.0
  %1049 = vmatprep.subr.mxu0 0.0
  %1050 = vmatpush2.msra.mxu0 0.0
  %1051 = vmatprep.subr.mxu0 0.0
  %1052 = vmatpush2.msra.mxu0 0.0
  %1053 = vmatprep.subr.mxu0 0.0
  %1054 = vmatpush2.msra.mxu0 0.0
  %1055 = vmatprep.subr.mxu0 0.0
  %1056 = vmatpush2.msra.mxu0 0.0
  %1057 = vmatprep.subr.mxu0 0.0
  %1058 = vmatpush2.msra.mxu0 0.0
  %1059 = vmatprep.subr.mxu0 0.0
  %1060 = vmatpush2.msra.mxu0 0.0
  %1061 = vmatprep.subr.mxu0 0.0
  %1062 = vmatpush2.msra.mxu0 0.0
  %1063 = vmatprep.subr.mxu0 0.0
  %1064 = vmatpush2.msra.mxu0 0.0
  %1065 = vmatprep.subr.mxu0 0.0
  %1066 = vmatpush2.msra.mxu0 0.0
  %1067 = vmatprep.subr.mxu0 0.0
  %1068 = vmatpush2.msra.mxu0 0.0
  %1069 = vmatprep.subr.mxu0 0.0
  %1070 = vmatpush2.msra.mxu0 0.0
  %1071 = vmatprep.subr.mxu0 0.0
  %1072 = vmatpush2.msra.mxu0 0.0
  %1073 = vmatprep.subr.mxu0 0.0
  %1074 = vmatpush2.msra.mxu0 0.0
  %1075 = vmatprep.mubr.f32.mxu0 0.0
  %1076 = vmatmul.mubr.f32.gmra.mxu0 %v898
  %v1077 = vpop.f32.mrf.mxu0
  %v1078 = vadd.f32 %v934, %v1077
  %v1079 = vpop.f32.mrf.mxu0
  %1080 = vmatprep.mubr.f32.mxu0 0.0
  %1081 = vmatmul.mubr.f32.gmra.mxu0 %v899
  %v1082 = vpop.f32.mrf.mxu0
  %v1083 = vadd.f32 %v939, %v1082
  %v1084 = vpop.f32.mrf.mxu0
  %1085 = vmatprep.mubr.f32.mxu0 0.0
  %1086 = vmatmul.mubr.f32.gmra.mxu0 %v900
  %v1087 = vpop.f32.mrf.mxu0
  %v1088 = vadd.f32 %v944, %v1087
  %v1089 = vpop.f32.mrf.mxu0
  %1090 = vmatprep.mubr.f32.mxu0 0.0
  %1091 = vmatmul.mubr.f32.gmra.mxu0 %v901
  %v1092 = vpop.f32.mrf.mxu0
  %v1093 = vadd.f32 %v949, %v1092
  %v1094 = vpop.f32.mrf.mxu0
  %1095 = vmatprep.mubr.f32.mxu0 0.0
  %1096 = vmatmul.mubr.f32.gmra.mxu0 %v902
  %v1097 = vpop.f32.mrf.mxu0
  %v1098 = vadd.f32 %v954, %v1097
  %v1099 = vpop.f32.mrf.mxu0
  %1100 = vmatprep.mubr.f32.mxu0 0.0
  %1101 = vmatmul.mubr.f32.gmra.mxu0 %v903
  %v1102 = vpop.f32.mrf.mxu0
  %v1103 = vadd.f32 %v959, %v1102
  %v1104 = vpop.f32.mrf.mxu0
  %1105 = vmatprep.mubr.f32.mxu0 0.0
  %1106 = vmatmul.mubr.f32.gmra.mxu0 %v904
  %v1107 = vpop.f32.mrf.mxu0
  %v1108 = vadd.f32 %v964, %v1107
  %v1109 = vpop.f32.mrf.mxu0
  %1110 = vmatprep.mubr.f32.mxu0 0.0
  %1111 = vmatmul.mubr.f32.gmra.mxu0 %v905
  %v1112 = vpop.f32.mrf.mxu0
  %v1113 = vadd.f32 %v969, %v1112
  %v1114 = vpop.f32.mrf.mxu0
  %1115 = vmatprep.mubr.f32.mxu0 0.0
  %1116 = vmatmul.mubr.f32.gmra.mxu0 %v906
  %v1117 = vpop.f32.mrf.mxu0
  %v1118 = vadd.f32 %v974, %v1117
  %v1119 = vpop.f32.mrf.mxu0
  %1120 = vmatprep.mubr.f32.mxu0 0.0
  %1121 = vmatmul.mubr.f32.gmra.mxu0 %v907
  %v1122 = vpop.f32.mrf.mxu0
  %v1123 = vadd.f32 %v979, %v1122
  %v1124 = vpop.f32.mrf.mxu0
  %1125 = vmatprep.mubr.f32.mxu0 0.0
  %1126 = vmatmul.mubr.f32.gmra.mxu0 %v908
  %v1127 = vpop.f32.mrf.mxu0
  %v1128 = vadd.f32 %v984, %v1127
  %v1129 = vpop.f32.mrf.mxu0
  %1130 = vmatprep.mubr.f32.mxu0 0.0
  %1131 = vmatmul.mubr.f32.gmra.mxu0 %v909
  %v1132 = vpop.f32.mrf.mxu0
  %v1133 = vadd.f32 %v989, %v1132
  %v1134 = vpop.f32.mrf.mxu0
  %1135 = vmatprep.mubr.f32.mxu0 0.0
  %1136 = vmatmul.mubr.f32.gmra.mxu0 %v910
  %v1137 = vpop.f32.mrf.mxu0
  %v1138 = vadd.f32 %v994, %v1137
  %v1139 = vpop.f32.mrf.mxu0
  %1140 = vmatprep.mubr.f32.mxu0 0.0
  %1141 = vmatmul.mubr.f32.gmra.mxu0 %v911
  %v1142 = vpop.f32.mrf.mxu0
  %v1143 = vadd.f32 %v999, %v1142
  %v1144 = vpop.f32.mrf.mxu0
  %1145 = vmatprep.mubr.f32.mxu0 0.0
  %1146 = vmatmul.mubr.f32.gmra.mxu0 %v912
  %v1147 = vpop.f32.mrf.mxu0
  %v1148 = vadd.f32 %v1004, %v1147
  %v1149 = vpop.f32.mrf.mxu0
  %1150 = vmatprep.mubr.f32.mxu0 0.0
  %1151 = vmatmul.mubr.f32.gmra.mxu0 %v913
  %v1152 = vpop.f32.mrf.mxu0
  %v1153 = vadd.f32 %v1009, %v1152
  %v1154 = vpop.f32.mrf.mxu0
  %1155 = vdwg.mxu0
  %v1156 = vtanh.pop %v1078
  %v1157 = vtanh.pop %v1083
  %v1158 = vtanh.pop %v1088
  %v1159 = vtanh.pop %v1093
  %v1160 = vtanh.pop %v1098
  %v1161 = vtanh.pop %v1103
  %v1162 = vtanh.pop %v1108
  %v1163 = vtanh.pop %v1113
  %v1164 = vtanh.pop %v1118
  %v1165 = vtanh.pop %v1123
  %v1166 = vtanh.pop %v1128
  %v1167 = vtanh.pop %v1133
  %v1168 = vtanh.pop %v1138
  %v1169 = vtanh.pop %v1143
  %v1170 = vtanh.pop %v1148
  %v1171 = vtanh.pop %v1153
  %s1172 = scalar_lea.vmem %s3, 384
  %v1173 = vld [vmem:[%s1172] sm:$0xff]
  %v1174 = vld [vmem:[%s1172 + $0x8] sm:$0xff]
  %v1175 = vld [vmem:[%s1172 + $0x10] sm:$0xff]
  %v1176 = vld [vmem:[%s1172 + $0x18] sm:$0xff]
  %v1177 = vld [vmem:[%s1172 + $0x20] sm:$0xff]
  %v1178 = vld [vmem:[%s1172 + $0x28] sm:$0xff]
  %v1179 = vld [vmem:[%s1172 + $0x30] sm:$0xff]
  %v1180 = vld [vmem:[%s1172 + $0x38] sm:$0xff]
  %v1181 = vld [vmem:[%s1172 + $0x40] sm:$0xff]
  %v1182 = vld [vmem:[%s1172 + $0x48] sm:$0xff]
  %v1183 = vld [vmem:[%s1172 + $0x50] sm:$0xff]
  %v1184 = vld [vmem:[%s1172 + $0x58] sm:$0xff]
  %v1185 = vld [vmem:[%s1172 + $0x60] sm:$0xff]
  %v1186 = vld [vmem:[%s1172 + $0x68] sm:$0xff]
  %v1187 = vld [vmem:[%s1172 + $0x70] sm:$0xff]
  %v1188 = vld [vmem:[%s1172 + $0x78] sm:$0xff]
  %s1189 = scalar_lea.vmem %s4, 384
  %v1190 = vld [vmem:[%s1189] sm:$0xff]
  %v1191 = vld [vmem:[%s1189 + $0x8] sm:$0xff]
  %v1192 = vld [vmem:[%s1189 + $0x10] sm:$0xff]
  %v1193 = vld [vmem:[%s1189 + $0x18] sm:$0xff]
  %v1194 = vld [vmem:[%s1189 + $0x20] sm:$0xff]
  %v1195 = vld [vmem:[%s1189 + $0x28] sm:$0xff]
  %v1196 = vld [vmem:[%s1189 + $0x30] sm:$0xff]
  %v1197 = vld [vmem:[%s1189 + $0x38] sm:$0xff]
  %v1198 = vld [vmem:[%s1189 + $0x40] sm:$0xff]
  %v1199 = vld [vmem:[%s1189 + $0x48] sm:$0xff]
  %v1200 = vld [vmem:[%s1189 + $0x50] sm:$0xff]
  %v1201 = vld [vmem:[%s1189 + $0x58] sm:$0xff]
  %v1202 = vld [vmem:[%s1189 + $0x60] sm:$0xff]
  %v1203 = vld [vmem:[%s1189 + $0x68] sm:$0xff]
  %v1204 = vld [vmem:[%s1189 + $0x70] sm:$0xff]
  %v1205 = vld [vmem:[%s1189 + $0x78] sm:$0xff]
  %1207 = vset.pattern.permute.xlu0 0
  %1208 = vperm.xlu0 %1207, %v1190
  %v1209 = vpop.permute.xlu0 %1208
  %1212 = vset.pattern.permute.xlu0 0
  %1213 = vperm.xlu0 %1212, %v1191
  %v1214 = vpop.permute.xlu0 %1213
  %1217 = vset.pattern.permute.xlu0 0
  %1218 = vperm.xlu0 %1217, %v1192
  %v1219 = vpop.permute.xlu0 %1218
  %1222 = vset.pattern.permute.xlu0 0
  %1223 = vperm.xlu0 %1222, %v1193
  %v1224 = vpop.permute.xlu0 %1223
  %1227 = vset.pattern.permute.xlu0 0
  %1228 = vperm.xlu0 %1227, %v1194
  %v1229 = vpop.permute.xlu0 %1228
  %1232 = vset.pattern.permute.xlu0 0
  %1233 = vperm.xlu0 %1232, %v1195
  %v1234 = vpop.permute.xlu0 %1233
  %1237 = vset.pattern.permute.xlu0 0
  %1238 = vperm.xlu0 %1237, %v1196
  %v1239 = vpop.permute.xlu0 %1238
  %1242 = vset.pattern.permute.xlu0 0
  %1243 = vperm.xlu0 %1242, %v1197
  %v1244 = vpop.permute.xlu0 %1243
  %1247 = vset.pattern.permute.xlu0 0
  %1248 = vperm.xlu0 %1247, %v1198
  %v1249 = vpop.permute.xlu0 %1248
  %1252 = vset.pattern.permute.xlu0 0
  %1253 = vperm.xlu0 %1252, %v1199
  %v1254 = vpop.permute.xlu0 %1253
  %1257 = vset.pattern.permute.xlu0 0
  %1258 = vperm.xlu0 %1257, %v1200
  %v1259 = vpop.permute.xlu0 %1258
  %1262 = vset.pattern.permute.xlu0 0
  %1263 = vperm.xlu0 %1262, %v1201
  %v1264 = vpop.permute.xlu0 %1263
  %1267 = vset.pattern.permute.xlu0 0
  %1268 = vperm.xlu0 %1267, %v1202
  %v1269 = vpop.permute.xlu0 %1268
  %1272 = vset.pattern.permute.xlu0 0
  %1273 = vperm.xlu0 %1272, %v1203
  %v1274 = vpop.permute.xlu0 %1273
  %1277 = vset.pattern.permute.xlu0 0
  %1278 = vperm.xlu0 %1277, %v1204
  %v1279 = vpop.permute.xlu0 %1278
  %1282 = vset.pattern.permute.xlu0 0
  %1283 = vperm.xlu0 %1282, %v1205
  %v1284 = vpop.permute.xlu0 %1283
  %1286 = vmatprep.subr.mxu0 0.0
  %1287 = vmatpush1.msra.mxu0 %v1171
  %1288 = vmatprep.subr.mxu0 0.0
  %1289 = vmatpush1.msra.mxu0 %v1170
  %1290 = vmatprep.subr.mxu0 0.0
  %1291 = vmatpush1.msra.mxu0 %v1169
  %1292 = vmatprep.subr.mxu0 0.0
  %1293 = vmatpush1.msra.mxu0 %v1168
  %1294 = vmatprep.subr.mxu0 0.0
  %1295 = vmatpush1.msra.mxu0 %v1167
  %1296 = vmatprep.subr.mxu0 0.0
  %1297 = vmatpush1.msra.mxu0 %v1166
  %1298 = vmatprep.subr.mxu0 0.0
  %1299 = vmatpush1.msra.mxu0 %v1165
  %1300 = vmatprep.subr.mxu0 0.0
  %1301 = vmatpush1.msra.mxu0 %v1164
  %1302 = vmatprep.subr.mxu0 0.0
  %1303 = vmatpush1.msra.mxu0 %v1163
  %1304 = vmatprep.subr.mxu0 0.0
  %1305 = vmatpush1.msra.mxu0 %v1162
  %1306 = vmatprep.subr.mxu0 0.0
  %1307 = vmatpush1.msra.mxu0 %v1161
  %1308 = vmatprep.subr.mxu0 0.0
  %1309 = vmatpush1.msra.mxu0 %v1160
  %1310 = vmatprep.subr.mxu0 0.0
  %1311 = vmatpush1.msra.mxu0 %v1159
  %1312 = vmatprep.subr.mxu0 0.0
  %1313 = vmatpush1.msra.mxu0 %v1158
  %1314 = vmatprep.subr.mxu0 0.0
  %1315 = vmatpush1.msra.mxu0 %v1157
  %1316 = vmatprep.subr.mxu0 0.0
  %1317 = vmatpush1.msra.mxu0 %v1156
  %1318 = vmatprep.subr.mxu0 0.0
  %1319 = vmatpush2.msra.mxu0 0.0
  %1320 = vmatprep.subr.mxu0 0.0
  %1321 = vmatpush2.msra.mxu0 0.0
  %1322 = vmatprep.subr.mxu0 0.0
  %1323 = vmatpush2.msra.mxu0 0.0
  %1324 = vmatprep.subr.mxu0 0.0
  %1325 = vmatpush2.msra.mxu0 0.0
  %1326 = vmatprep.subr.mxu0 0.0
  %1327 = vmatpush2.msra.mxu0 0.0
  %1328 = vmatprep.subr.mxu0 0.0
  %1329 = vmatpush2.msra.mxu0 0.0
  %1330 = vmatprep.subr.mxu0 0.0
  %1331 = vmatpush2.msra.mxu0 0.0
  %1332 = vmatprep.subr.mxu0 0.0
  %1333 = vmatpush2.msra.mxu0 0.0
  %1334 = vmatprep.subr.mxu0 0.0
  %1335 = vmatpush2.msra.mxu0 0.0
  %1336 = vmatprep.subr.mxu0 0.0
  %1337 = vmatpush2.msra.mxu0 0.0
  %1338 = vmatprep.subr.mxu0 0.0
  %1339 = vmatpush2.msra.mxu0 0.0
  %1340 = vmatprep.subr.mxu0 0.0
  %1341 = vmatpush2.msra.mxu0 0.0
  %1342 = vmatprep.subr.mxu0 0.0
  %1343 = vmatpush2.msra.mxu0 0.0
  %1344 = vmatprep.subr.mxu0 0.0
  %1345 = vmatpush2.msra.mxu0 0.0
  %1346 = vmatprep.subr.mxu0 0.0
  %1347 = vmatpush2.msra.mxu0 0.0
  %1348 = vmatprep.subr.mxu0 0.0
  %1349 = vmatpush2.msra.mxu0 0.0
  %1350 = vmatprep.mubr.f32.mxu0 0.0
  %1351 = vmatmul.mubr.f32.gmra.mxu0 %v1173
  %v1352 = vpop.f32.mrf.mxu0
  %v1353 = vadd.f32 %v1209, %v1352
  %v1354 = vpop.f32.mrf.mxu0
  %1355 = vmatprep.mubr.f32.mxu0 0.0
  %1356 = vmatmul.mubr.f32.gmra.mxu0 %v1174
  %v1357 = vpop.f32.mrf.mxu0
  %v1358 = vadd.f32 %v1214, %v1357
  %v1359 = vpop.f32.mrf.mxu0
  %1360 = vmatprep.mubr.f32.mxu0 0.0
  %1361 = vmatmul.mubr.f32.gmra.mxu0 %v1175
  %v1362 = vpop.f32.mrf.mxu0
  %v1363 = vadd.f32 %v1219, %v1362
  %v1364 = vpop.f32.mrf.mxu0
  %1365 = vmatprep.mubr.f32.mxu0 0.0
  %1366 = vmatmul.mubr.f32.gmra.mxu0 %v1176
  %v1367 = vpop.f32.mrf.mxu0
  %v1368 = vadd.f32 %v1224, %v1367
  %v1369 = vpop.f32.mrf.mxu0
  %1370 = vmatprep.mubr.f32.mxu0 0.0
  %1371 = vmatmul.mubr.f32.gmra.mxu0 %v1177
  %v1372 = vpop.f32.mrf.mxu0
  %v1373 = vadd.f32 %v1229, %v1372
  %v1374 = vpop.f32.mrf.mxu0
  %1375 = vmatprep.mubr.f32.mxu0 0.0
  %1376 = vmatmul.mubr.f32.gmra.mxu0 %v1178
  %v1377 = vpop.f32.mrf.mxu0
  %v1378 = vadd.f32 %v1234, %v1377
  %v1379 = vpop.f32.mrf.mxu0
  %1380 = vmatprep.mubr.f32.mxu0 0.0
  %1381 = vmatmul.mubr.f32.gmra.mxu0 %v1179
  %v1382 = vpop.f32.mrf.mxu0
  %v1383 = vadd.f32 %v1239, %v1382
  %v1384 = vpop.f32.mrf.mxu0
  %1385 = vmatprep.mubr.f32.mxu0 0.0
  %1386 = vmatmul.mubr.f32.gmra.mxu0 %v1180
  %v1387 = vpop.f32.mrf.mxu0
  %v1388 = vadd.f32 %v1244, %v1387
  %v1389 = vpop.f32.mrf.mxu0
  %1390 = vmatprep.mubr.f32.mxu0 0.0
  %1391 = vmatmul.mubr.f32.gmra.mxu0 %v1181
  %v1392 = vpop.f32.mrf.mxu0
  %v1393 = vadd.f32 %v1249, %v1392
  %v1394 = vpop.f32.mrf.mxu0
  %1395 = vmatprep.mubr.f32.mxu0 0.0
  %1396 = vmatmul.mubr.f32.gmra.mxu0 %v1182
  %v1397 = vpop.f32.mrf.mxu0
  %v1398 = vadd.f32 %v1254, %v1397
  %v1399 = vpop.f32.mrf.mxu0
  %1400 = vmatprep.mubr.f32.mxu0 0.0
  %1401 = vmatmul.mubr.f32.gmra.mxu0 %v1183
  %v1402 = vpop.f32.mrf.mxu0
  %v1403 = vadd.f32 %v1259, %v1402
  %v1404 = vpop.f32.mrf.mxu0
  %1405 = vmatprep.mubr.f32.mxu0 0.0
  %1406 = vmatmul.mubr.f32.gmra.mxu0 %v1184
  %v1407 = vpop.f32.mrf.mxu0
  %v1408 = vadd.f32 %v1264, %v1407
  %v1409 = vpop.f32.mrf.mxu0
  %1410 = vmatprep.mubr.f32.mxu0 0.0
  %1411 = vmatmul.mubr.f32.gmra.mxu0 %v1185
  %v1412 = vpop.f32.mrf.mxu0
  %v1413 = vadd.f32 %v1269, %v1412
  %v1414 = vpop.f32.mrf.mxu0
  %1415 = vmatprep.mubr.f32.mxu0 0.0
  %1416 = vmatmul.mubr.f32.gmra.mxu0 %v1186
  %v1417 = vpop.f32.mrf.mxu0
  %v1418 = vadd.f32 %v1274, %v1417
  %v1419 = vpop.f32.mrf.mxu0
  %1420 = vmatprep.mubr.f32.mxu0 0.0
  %1421 = vmatmul.mubr.f32.gmra.mxu0 %v1187
  %v1422 = vpop.f32.mrf.mxu0
  %v1423 = vadd.f32 %v1279, %v1422
  %v1424 = vpop.f32.mrf.mxu0
  %1425 = vmatprep.mubr.f32.mxu0 0.0
  %1426 = vmatmul.mubr.f32.gmra.mxu0 %v1188
  %v1427 = vpop.f32.mrf.mxu0
  %v1428 = vadd.f32 %v1284, %v1427
  %v1429 = vpop.f32.mrf.mxu0
  %1430 = vdwg.mxu0
  %v1431 = vtanh.pop %v1353
  %v1432 = vtanh.pop %v1358
  %v1433 = vtanh.pop %v1363
  %v1434 = vtanh.pop %v1368
  %v1435 = vtanh.pop %v1373
  %v1436 = vtanh.pop %v1378
  %v1437 = vtanh.pop %v1383
  %v1438 = vtanh.pop %v1388
  %v1439 = vtanh.pop %v1393
  %v1440 = vtanh.pop %v1398
  %v1441 = vtanh.pop %v1403
  %v1442 = vtanh.pop %v1408
  %v1443 = vtanh.pop %v1413
  %v1444 = vtanh.pop %v1418
  %v1445 = vtanh.pop %v1423
  %v1446 = vtanh.pop %v1428
  %s1447 = scalar_lea.vmem %s3, 512
  %v1448 = vld [vmem:[%s1447] sm:$0xff]
  %v1449 = vld [vmem:[%s1447 + $0x8] sm:$0xff]
  %v1450 = vld [vmem:[%s1447 + $0x10] sm:$0xff]
  %v1451 = vld [vmem:[%s1447 + $0x18] sm:$0xff]
  %v1452 = vld [vmem:[%s1447 + $0x20] sm:$0xff]
  %v1453 = vld [vmem:[%s1447 + $0x28] sm:$0xff]
  %v1454 = vld [vmem:[%s1447 + $0x30] sm:$0xff]
  %v1455 = vld [vmem:[%s1447 + $0x38] sm:$0xff]
  %v1456 = vld [vmem:[%s1447 + $0x40] sm:$0xff]
  %v1457 = vld [vmem:[%s1447 + $0x48] sm:$0xff]
  %v1458 = vld [vmem:[%s1447 + $0x50] sm:$0xff]
  %v1459 = vld [vmem:[%s1447 + $0x58] sm:$0xff]
  %v1460 = vld [vmem:[%s1447 + $0x60] sm:$0xff]
  %v1461 = vld [vmem:[%s1447 + $0x68] sm:$0xff]
  %v1462 = vld [vmem:[%s1447 + $0x70] sm:$0xff]
  %v1463 = vld [vmem:[%s1447 + $0x78] sm:$0xff]
  %s1464 = scalar_lea.vmem %s4, 512
  %v1465 = vld [vmem:[%s1464] sm:$0xff]
  %v1466 = vld [vmem:[%s1464 + $0x8] sm:$0xff]
  %v1467 = vld [vmem:[%s1464 + $0x10] sm:$0xff]
  %v1468 = vld [vmem:[%s1464 + $0x18] sm:$0xff]
  %v1469 = vld [vmem:[%s1464 + $0x20] sm:$0xff]
  %v1470 = vld [vmem:[%s1464 + $0x28] sm:$0xff]
  %v1471 = vld [vmem:[%s1464 + $0x30] sm:$0xff]
  %v1472 = vld [vmem:[%s1464 + $0x38] sm:$0xff]
  %v1473 = vld [vmem:[%s1464 + $0x40] sm:$0xff]
  %v1474 = vld [vmem:[%s1464 + $0x48] sm:$0xff]
  %v1475 = vld [vmem:[%s1464 + $0x50] sm:$0xff]
  %v1476 = vld [vmem:[%s1464 + $0x58] sm:$0xff]
  %v1477 = vld [vmem:[%s1464 + $0x60] sm:$0xff]
  %v1478 = vld [vmem:[%s1464 + $0x68] sm:$0xff]
  %v1479 = vld [vmem:[%s1464 + $0x70] sm:$0xff]
  %v1480 = vld [vmem:[%s1464 + $0x78] sm:$0xff]
  %1482 = vset.pattern.permute.xlu0 0
  %1483 = vperm.xlu0 %1482, %v1465
  %v1484 = vpop.permute.xlu0 %1483
  %1487 = vset.pattern.permute.xlu0 0
  %1488 = vperm.xlu0 %1487, %v1466
  %v1489 = vpop.permute.xlu0 %1488
  %1492 = vset.pattern.permute.xlu0 0
  %1493 = vperm.xlu0 %1492, %v1467
  %v1494 = vpop.permute.xlu0 %1493
  %1497 = vset.pattern.permute.xlu0 0
  %1498 = vperm.xlu0 %1497, %v1468
  %v1499 = vpop.permute.xlu0 %1498
  %1502 = vset.pattern.permute.xlu0 0
  %1503 = vperm.xlu0 %1502, %v1469
  %v1504 = vpop.permute.xlu0 %1503
  %1507 = vset.pattern.permute.xlu0 0
  %1508 = vperm.xlu0 %1507, %v1470
  %v1509 = vpop.permute.xlu0 %1508
  %1512 = vset.pattern.permute.xlu0 0
  %1513 = vperm.xlu0 %1512, %v1471
  %v1514 = vpop.permute.xlu0 %1513
  %1517 = vset.pattern.permute.xlu0 0
  %1518 = vperm.xlu0 %1517, %v1472
  %v1519 = vpop.permute.xlu0 %1518
  %1522 = vset.pattern.permute.xlu0 0
  %1523 = vperm.xlu0 %1522, %v1473
  %v1524 = vpop.permute.xlu0 %1523
  %1527 = vset.pattern.permute.xlu0 0
  %1528 = vperm.xlu0 %1527, %v1474
  %v1529 = vpop.permute.xlu0 %1528
  %1532 = vset.pattern.permute.xlu0 0
  %1533 = vperm.xlu0 %1532, %v1475
  %v1534 = vpop.permute.xlu0 %1533
  %1537 = vset.pattern.permute.xlu0 0
  %1538 = vperm.xlu0 %1537, %v1476
  %v1539 = vpop.permute.xlu0 %1538
  %1542 = vset.pattern.permute.xlu0 0
  %1543 = vperm.xlu0 %1542, %v1477
  %v1544 = vpop.permute.xlu0 %1543
  %1547 = vset.pattern.permute.xlu0 0
  %1548 = vperm.xlu0 %1547, %v1478
  %v1549 = vpop.permute.xlu0 %1548
  %1552 = vset.pattern.permute.xlu0 0
  %1553 = vperm.xlu0 %1552, %v1479
  %v1554 = vpop.permute.xlu0 %1553
  %1557 = vset.pattern.permute.xlu0 0
  %1558 = vperm.xlu0 %1557, %v1480
  %v1559 = vpop.permute.xlu0 %1558
  %1561 = vmatprep.subr.mxu0 0.0
  %1562 = vmatpush1.msra.mxu0 %v1446
  %1563 = vmatprep.subr.mxu0 0.0
  %1564 = vmatpush1.msra.mxu0 %v1445
  %1565 = vmatprep.subr.mxu0 0.0
  %1566 = vmatpush1.msra.mxu0 %v1444
  %1567 = vmatprep.subr.mxu0 0.0
  %1568 = vmatpush1.msra.mxu0 %v1443
  %1569 = vmatprep.subr.mxu0 0.0
  %1570 = vmatpush1.msra.mxu0 %v1442
  %1571 = vmatprep.subr.mxu0 0.0
  %1572 = vmatpush1.msra.mxu0 %v1441
  %1573 = vmatprep.subr.mxu0 0.0
  %1574 = vmatpush1.msra.mxu0 %v1440
  %1575 = vmatprep.subr.mxu0 0.0
  %1576 = vmatpush1.msra.mxu0 %v1439
  %1577 = vmatprep.subr.mxu0 0.0
  %1578 = vmatpush1.msra.mxu0 %v1438
  %1579 = vmatprep.subr.mxu0 0.0
  %1580 = vmatpush1.msra.mxu0 %v1437
  %1581 = vmatprep.subr.mxu0 0.0
  %1582 = vmatpush1.msra.mxu0 %v1436
  %1583 = vmatprep.subr.mxu0 0.0
  %1584 = vmatpush1.msra.mxu0 %v1435
  %1585 = vmatprep.subr.mxu0 0.0
  %1586 = vmatpush1.msra.mxu0 %v1434
  %1587 = vmatprep.subr.mxu0 0.0
  %1588 = vmatpush1.msra.mxu0 %v1433
  %1589 = vmatprep.subr.mxu0 0.0
  %1590 = vmatpush1.msra.mxu0 %v1432
  %1591 = vmatprep.subr.mxu0 0.0
  %1592 = vmatpush1.msra.mxu0 %v1431
  %1593 = vmatprep.subr.mxu0 0.0
  %1594 = vmatpush2.msra.mxu0 0.0
  %1595 = vmatprep.subr.mxu0 0.0
  %1596 = vmatpush2.msra.mxu0 0.0
  %1597 = vmatprep.subr.mxu0 0.0
  %1598 = vmatpush2.msra.mxu0 0.0
  %1599 = vmatprep.subr.mxu0 0.0
  %1600 = vmatpush2.msra.mxu0 0.0
  %1601 = vmatprep.subr.mxu0 0.0
  %1602 = vmatpush2.msra.mxu0 0.0
  %1603 = vmatprep.subr.mxu0 0.0
  %1604 = vmatpush2.msra.mxu0 0.0
  %1605 = vmatprep.subr.mxu0 0.0
  %1606 = vmatpush2.msra.mxu0 0.0
  %1607 = vmatprep.subr.mxu0 0.0
  %1608 = vmatpush2.msra.mxu0 0.0
  %1609 = vmatprep.subr.mxu0 0.0
  %1610 = vmatpush2.msra.mxu0 0.0
  %1611 = vmatprep.subr.mxu0 0.0
  %1612 = vmatpush2.msra.mxu0 0.0
  %1613 = vmatprep.subr.mxu0 0.0
  %1614 = vmatpush2.msra.mxu0 0.0
  %1615 = vmatprep.subr.mxu0 0.0
  %1616 = vmatpush2.msra.mxu0 0.0
  %1617 = vmatprep.subr.mxu0 0.0
  %1618 = vmatpush2.msra.mxu0 0.0
  %1619 = vmatprep.subr.mxu0 0.0
  %1620 = vmatpush2.msra.mxu0 0.0
  %1621 = vmatprep.subr.mxu0 0.0
  %1622 = vmatpush2.msra.mxu0 0.0
  %1623 = vmatprep.subr.mxu0 0.0
  %1624 = vmatpush2.msra.mxu0 0.0
  %1625 = vmatprep.mubr.f32.mxu0 0.0
  %1626 = vmatmul.mubr.f32.gmra.mxu0 %v1448
  %v1627 = vpop.f32.mrf.mxu0
  %v1628 = vadd.f32 %v1484, %v1627
  %v1629 = vpop.f32.mrf.mxu0
  %1630 = vmatprep.mubr.f32.mxu0 0.0
  %1631 = vmatmul.mubr.f32.gmra.mxu0 %v1449
  %v1632 = vpop.f32.mrf.mxu0
  %v1633 = vadd.f32 %v1489, %v1632
  %v1634 = vpop.f32.mrf.mxu0
  %1635 = vmatprep.mubr.f32.mxu0 0.0
  %1636 = vmatmul.mubr.f32.gmra.mxu0 %v1450
  %v1637 = vpop.f32.mrf.mxu0
  %v1638 = vadd.f32 %v1494, %v1637
  %v1639 = vpop.f32.mrf.mxu0
  %1640 = vmatprep.mubr.f32.mxu0 0.0
  %1641 = vmatmul.mubr.f32.gmra.mxu0 %v1451
  %v1642 = vpop.f32.mrf.mxu0
  %v1643 = vadd.f32 %v1499, %v1642
  %v1644 = vpop.f32.mrf.mxu0
  %1645 = vmatprep.mubr.f32.mxu0 0.0
  %1646 = vmatmul.mubr.f32.gmra.mxu0 %v1452
  %v1647 = vpop.f32.mrf.mxu0
  %v1648 = vadd.f32 %v1504, %v1647
  %v1649 = vpop.f32.mrf.mxu0
  %1650 = vmatprep.mubr.f32.mxu0 0.0
  %1651 = vmatmul.mubr.f32.gmra.mxu0 %v1453
  %v1652 = vpop.f32.mrf.mxu0
  %v1653 = vadd.f32 %v1509, %v1652
  %v1654 = vpop.f32.mrf.mxu0
  %1655 = vmatprep.mubr.f32.mxu0 0.0
  %1656 = vmatmul.mubr.f32.gmra.mxu0 %v1454
  %v1657 = vpop.f32.mrf.mxu0
  %v1658 = vadd.f32 %v1514, %v1657
  %v1659 = vpop.f32.mrf.mxu0
  %1660 = vmatprep.mubr.f32.mxu0 0.0
  %1661 = vmatmul.mubr.f32.gmra.mxu0 %v1455
  %v1662 = vpop.f32.mrf.mxu0
  %v1663 = vadd.f32 %v1519, %v1662
  %v1664 = vpop.f32.mrf.mxu0
  %1665 = vmatprep.mubr.f32.mxu0 0.0
  %1666 = vmatmul.mubr.f32.gmra.mxu0 %v1456
  %v1667 = vpop.f32.mrf.mxu0
  %v1668 = vadd.f32 %v1524, %v1667
  %v1669 = vpop.f32.mrf.mxu0
  %1670 = vmatprep.mubr.f32.mxu0 0.0
  %1671 = vmatmul.mubr.f32.gmra.mxu0 %v1457
  %v1672 = vpop.f32.mrf.mxu0
  %v1673 = vadd.f32 %v1529, %v1672
  %v1674 = vpop.f32.mrf.mxu0
  %1675 = vmatprep.mubr.f32.mxu0 0.0
  %1676 = vmatmul.mubr.f32.gmra.mxu0 %v1458
  %v1677 = vpop.f32.mrf.mxu0
  %v1678 = vadd.f32 %v1534, %v1677
  %v1679 = vpop.f32.mrf.mxu0
  %1680 = vmatprep.mubr.f32.mxu0 0.0
  %1681 = vmatmul.mubr.f32.gmra.mxu0 %v1459
  %v1682 = vpop.f32.mrf.mxu0
  %v1683 = vadd.f32 %v1539, %v1682
  %v1684 = vpop.f32.mrf.mxu0
  %1685 = vmatprep.mubr.f32.mxu0 0.0
  %1686 = vmatmul.mubr.f32.gmra.mxu0 %v1460
  %v1687 = vpop.f32.mrf.mxu0
  %v1688 = vadd.f32 %v1544, %v1687
  %v1689 = vpop.f32.mrf.mxu0
  %1690 = vmatprep.mubr.f32.mxu0 0.0
  %1691 = vmatmul.mubr.f32.gmra.mxu0 %v1461
  %v1692 = vpop.f32.mrf.mxu0
  %v1693 = vadd.f32 %v1549, %v1692
  %v1694 = vpop.f32.mrf.mxu0
  %1695 = vmatprep.mubr.f32.mxu0 0.0
  %1696 = vmatmul.mubr.f32.gmra.mxu0 %v1462
  %v1697 = vpop.f32.mrf.mxu0
  %v1698 = vadd.f32 %v1554, %v1697
  %v1699 = vpop.f32.mrf.mxu0
  %1700 = vmatprep.mubr.f32.mxu0 0.0
  %1701 = vmatmul.mubr.f32.gmra.mxu0 %v1463
  %v1702 = vpop.f32.mrf.mxu0
  %v1703 = vadd.f32 %v1559, %v1702
  %v1704 = vpop.f32.mrf.mxu0
  %1705 = vdwg.mxu0
  %v1706 = vtanh.pop %v1628
  %v1707 = vtanh.pop %v1633
  %v1708 = vtanh.pop %v1638
  %v1709 = vtanh.pop %v1643
  %v1710 = vtanh.pop %v1648
  %v1711 = vtanh.pop %v1653
  %v1712 = vtanh.pop %v1658
  %v1713 = vtanh.pop %v1663
  %v1714 = vtanh.pop %v1668
  %v1715 = vtanh.pop %v1673
  %v1716 = vtanh.pop %v1678
  %v1717 = vtanh.pop %v1683
  %v1718 = vtanh.pop %v1688
  %v1719 = vtanh.pop %v1693
  %v1720 = vtanh.pop %v1698
  %v1721 = vtanh.pop %v1703
  %s1722 = scalar_lea.vmem %s3, 640
  %v1723 = vld [vmem:[%s1722] sm:$0xff]
  %v1724 = vld [vmem:[%s1722 + $0x8] sm:$0xff]
  %v1725 = vld [vmem:[%s1722 + $0x10] sm:$0xff]
  %v1726 = vld [vmem:[%s1722 + $0x18] sm:$0xff]
  %v1727 = vld [vmem:[%s1722 + $0x20] sm:$0xff]
  %v1728 = vld [vmem:[%s1722 + $0x28] sm:$0xff]
  %v1729 = vld [vmem:[%s1722 + $0x30] sm:$0xff]
  %v1730 = vld [vmem:[%s1722 + $0x38] sm:$0xff]
  %v1731 = vld [vmem:[%s1722 + $0x40] sm:$0xff]
  %v1732 = vld [vmem:[%s1722 + $0x48] sm:$0xff]
  %v1733 = vld [vmem:[%s1722 + $0x50] sm:$0xff]
  %v1734 = vld [vmem:[%s1722 + $0x58] sm:$0xff]
  %v1735 = vld [vmem:[%s1722 + $0x60] sm:$0xff]
  %v1736 = vld [vmem:[%s1722 + $0x68] sm:$0xff]
  %v1737 = vld [vmem:[%s1722 + $0x70] sm:$0xff]
  %v1738 = vld [vmem:[%s1722 + $0x78] sm:$0xff]
  %s1739 = scalar_lea.vmem %s4, 640
  %v1740 = vld [vmem:[%s1739] sm:$0xff]
  %v1741 = vld [vmem:[%s1739 + $0x8] sm:$0xff]
  %v1742 = vld [vmem:[%s1739 + $0x10] sm:$0xff]
  %v1743 = vld [vmem:[%s1739 + $0x18] sm:$0xff]
  %v1744 = vld [vmem:[%s1739 + $0x20] sm:$0xff]
  %v1745 = vld [vmem:[%s1739 + $0x28] sm:$0xff]
  %v1746 = vld [vmem:[%s1739 + $0x30] sm:$0xff]
  %v1747 = vld [vmem:[%s1739 + $0x38] sm:$0xff]
  %v1748 = vld [vmem:[%s1739 + $0x40] sm:$0xff]
  %v1749 = vld [vmem:[%s1739 + $0x48] sm:$0xff]
  %v1750 = vld [vmem:[%s1739 + $0x50] sm:$0xff]
  %v1751 = vld [vmem:[%s1739 + $0x58] sm:$0xff]
  %v1752 = vld [vmem:[%s1739 + $0x60] sm:$0xff]
  %v1753 = vld [vmem:[%s1739 + $0x68] sm:$0xff]
  %v1754 = vld [vmem:[%s1739 + $0x70] sm:$0xff]
  %v1755 = vld [vmem:[%s1739 + $0x78] sm:$0xff]
  %1757 = vset.pattern.permute.xlu0 0
  %1758 = vperm.xlu0 %1757, %v1740
  %v1759 = vpop.permute.xlu0 %1758
  %1762 = vset.pattern.permute.xlu0 0
  %1763 = vperm.xlu0 %1762, %v1741
  %v1764 = vpop.permute.xlu0 %1763
  %1767 = vset.pattern.permute.xlu0 0
  %1768 = vperm.xlu0 %1767, %v1742
  %v1769 = vpop.permute.xlu0 %1768
  %1772 = vset.pattern.permute.xlu0 0
  %1773 = vperm.xlu0 %1772, %v1743
  %v1774 = vpop.permute.xlu0 %1773
  %1777 = vset.pattern.permute.xlu0 0
  %1778 = vperm.xlu0 %1777, %v1744
  %v1779 = vpop.permute.xlu0 %1778
  %1782 = vset.pattern.permute.xlu0 0
  %1783 = vperm.xlu0 %1782, %v1745
  %v1784 = vpop.permute.xlu0 %1783
  %1787 = vset.pattern.permute.xlu0 0
  %1788 = vperm.xlu0 %1787, %v1746
  %v1789 = vpop.permute.xlu0 %1788
  %1792 = vset.pattern.permute.xlu0 0
  %1793 = vperm.xlu0 %1792, %v1747
  %v1794 = vpop.permute.xlu0 %1793
  %1797 = vset.pattern.permute.xlu0 0
  %1798 = vperm.xlu0 %1797, %v1748
  %v1799 = vpop.permute.xlu0 %1798
  %1802 = vset.pattern.permute.xlu0 0
  %1803 = vperm.xlu0 %1802, %v1749
  %v1804 = vpop.permute.xlu0 %1803
  %1807 = vset.pattern.permute.xlu0 0
  %1808 = vperm.xlu0 %1807, %v1750
  %v1809 = vpop.permute.xlu0 %1808
  %1812 = vset.pattern.permute.xlu0 0
  %1813 = vperm.xlu0 %1812, %v1751
  %v1814 = vpop.permute.xlu0 %1813
  %1817 = vset.pattern.permute.xlu0 0
  %1818 = vperm.xlu0 %1817, %v1752
  %v1819 = vpop.permute.xlu0 %1818
  %1822 = vset.pattern.permute.xlu0 0
  %1823 = vperm.xlu0 %1822, %v1753
  %v1824 = vpop.permute.xlu0 %1823
  %1827 = vset.pattern.permute.xlu0 0
  %1828 = vperm.xlu0 %1827, %v1754
  %v1829 = vpop.permute.xlu0 %1828
  %1832 = vset.pattern.permute.xlu0 0
  %1833 = vperm.xlu0 %1832, %v1755
  %v1834 = vpop.permute.xlu0 %1833
  %1836 = vmatprep.subr.mxu0 0.0
  %1837 = vmatpush1.msra.mxu0 %v1721
  %1838 = vmatprep.subr.mxu0 0.0
  %1839 = vmatpush1.msra.mxu0 %v1720
  %1840 = vmatprep.subr.mxu0 0.0
  %1841 = vmatpush1.msra.mxu0 %v1719
  %1842 = vmatprep.subr.mxu0 0.0
  %1843 = vmatpush1.msra.mxu0 %v1718
  %1844 = vmatprep.subr.mxu0 0.0
  %1845 = vmatpush1.msra.mxu0 %v1717
  %1846 = vmatprep.subr.mxu0 0.0
  %1847 = vmatpush1.msra.mxu0 %v1716
  %1848 = vmatprep.subr.mxu0 0.0
  %1849 = vmatpush1.msra.mxu0 %v1715
  %1850 = vmatprep.subr.mxu0 0.0
  %1851 = vmatpush1.msra.mxu0 %v1714
  %1852 = vmatprep.subr.mxu0 0.0
  %1853 = vmatpush1.msra.mxu0 %v1713
  %1854 = vmatprep.subr.mxu0 0.0
  %1855 = vmatpush1.msra.mxu0 %v1712
  %1856 = vmatprep.subr.mxu0 0.0
  %1857 = vmatpush1.msra.mxu0 %v1711
  %1858 = vmatprep.subr.mxu0 0.0
  %1859 = vmatpush1.msra.mxu0 %v1710
  %1860 = vmatprep.subr.mxu0 0.0
  %1861 = vmatpush1.msra.mxu0 %v1709
  %1862 = vmatprep.subr.mxu0 0.0
  %1863 = vmatpush1.msra.mxu0 %v1708
  %1864 = vmatprep.subr.mxu0 0.0
  %1865 = vmatpush1.msra.mxu0 %v1707
  %1866 = vmatprep.subr.mxu0 0.0
  %1867 = vmatpush1.msra.mxu0 %v1706
  %1868 = vmatprep.subr.mxu0 0.0
  %1869 = vmatpush2.msra.mxu0 0.0
  %1870 = vmatprep.subr.mxu0 0.0
  %1871 = vmatpush2.msra.mxu0 0.0
  %1872 = vmatprep.subr.mxu0 0.0
  %1873 = vmatpush2.msra.mxu0 0.0
  %1874 = vmatprep.subr.mxu0 0.0
  %1875 = vmatpush2.msra.mxu0 0.0
  %1876 = vmatprep.subr.mxu0 0.0
  %1877 = vmatpush2.msra.mxu0 0.0
  %1878 = vmatprep.subr.mxu0 0.0
  %1879 = vmatpush2.msra.mxu0 0.0
  %1880 = vmatprep.subr.mxu0 0.0
  %1881 = vmatpush2.msra.mxu0 0.0
  %1882 = vmatprep.subr.mxu0 0.0
  %1883 = vmatpush2.msra.mxu0 0.0
  %1884 = vmatprep.subr.mxu0 0.0
  %1885 = vmatpush2.msra.mxu0 0.0
  %1886 = vmatprep.subr.mxu0 0.0
  %1887 = vmatpush2.msra.mxu0 0.0
  %1888 = vmatprep.subr.mxu0 0.0
  %1889 = vmatpush2.msra.mxu0 0.0
  %1890 = vmatprep.subr.mxu0 0.0
  %1891 = vmatpush2.msra.mxu0 0.0
  %1892 = vmatprep.subr.mxu0 0.0
  %1893 = vmatpush2.msra.mxu0 0.0
  %1894 = vmatprep.subr.mxu0 0.0
  %1895 = vmatpush2.msra.mxu0 0.0
  %1896 = vmatprep.subr.mxu0 0.0
  %1897 = vmatpush2.msra.mxu0 0.0
  %1898 = vmatprep.subr.mxu0 0.0
  %1899 = vmatpush2.msra.mxu0 0.0
  %1900 = vmatprep.mubr.f32.mxu0 0.0
  %1901 = vmatmul.mubr.f32.gmra.mxu0 %v1723
  %v1902 = vpop.f32.mrf.mxu0
  %v1903 = vadd.f32 %v1759, %v1902
  %v1904 = vpop.f32.mrf.mxu0
  %1905 = vmatprep.mubr.f32.mxu0 0.0
  %1906 = vmatmul.mubr.f32.gmra.mxu0 %v1724
  %v1907 = vpop.f32.mrf.mxu0
  %v1908 = vadd.f32 %v1764, %v1907
  %v1909 = vpop.f32.mrf.mxu0
  %1910 = vmatprep.mubr.f32.mxu0 0.0
  %1911 = vmatmul.mubr.f32.gmra.mxu0 %v1725
  %v1912 = vpop.f32.mrf.mxu0
  %v1913 = vadd.f32 %v1769, %v1912
  %v1914 = vpop.f32.mrf.mxu0
  %1915 = vmatprep.mubr.f32.mxu0 0.0
  %1916 = vmatmul.mubr.f32.gmra.mxu0 %v1726
  %v1917 = vpop.f32.mrf.mxu0
  %v1918 = vadd.f32 %v1774, %v1917
  %v1919 = vpop.f32.mrf.mxu0
  %1920 = vmatprep.mubr.f32.mxu0 0.0
  %1921 = vmatmul.mubr.f32.gmra.mxu0 %v1727
  %v1922 = vpop.f32.mrf.mxu0
  %v1923 = vadd.f32 %v1779, %v1922
  %v1924 = vpop.f32.mrf.mxu0
  %1925 = vmatprep.mubr.f32.mxu0 0.0
  %1926 = vmatmul.mubr.f32.gmra.mxu0 %v1728
  %v1927 = vpop.f32.mrf.mxu0
  %v1928 = vadd.f32 %v1784, %v1927
  %v1929 = vpop.f32.mrf.mxu0
  %1930 = vmatprep.mubr.f32.mxu0 0.0
  %1931 = vmatmul.mubr.f32.gmra.mxu0 %v1729
  %v1932 = vpop.f32.mrf.mxu0
  %v1933 = vadd.f32 %v1789, %v1932
  %v1934 = vpop.f32.mrf.mxu0
  %1935 = vmatprep.mubr.f32.mxu0 0.0
  %1936 = vmatmul.mubr.f32.gmra.mxu0 %v1730
  %v1937 = vpop.f32.mrf.mxu0
  %v1938 = vadd.f32 %v1794, %v1937
  %v1939 = vpop.f32.mrf.mxu0
  %1940 = vmatprep.mubr.f32.mxu0 0.0
  %1941 = vmatmul.mubr.f32.gmra.mxu0 %v1731
  %v1942 = vpop.f32.mrf.mxu0
  %v1943 = vadd.f32 %v1799, %v1942
  %v1944 = vpop.f32.mrf.mxu0
  %1945 = vmatprep.mubr.f32.mxu0 0.0
  %1946 = vmatmul.mubr.f32.gmra.mxu0 %v1732
  %v1947 = vpop.f32.mrf.mxu0
  %v1948 = vadd.f32 %v1804, %v1947
  %v1949 = vpop.f32.mrf.mxu0
  %1950 = vmatprep.mubr.f32.mxu0 0.0
  %1951 = vmatmul.mubr.f32.gmra.mxu0 %v1733
  %v1952 = vpop.f32.mrf.mxu0
  %v1953 = vadd.f32 %v1809, %v1952
  %v1954 = vpop.f32.mrf.mxu0
  %1955 = vmatprep.mubr.f32.mxu0 0.0
  %1956 = vmatmul.mubr.f32.gmra.mxu0 %v1734
  %v1957 = vpop.f32.mrf.mxu0
  %v1958 = vadd.f32 %v1814, %v1957
  %v1959 = vpop.f32.mrf.mxu0
  %1960 = vmatprep.mubr.f32.mxu0 0.0
  %1961 = vmatmul.mubr.f32.gmra.mxu0 %v1735
  %v1962 = vpop.f32.mrf.mxu0
  %v1963 = vadd.f32 %v1819, %v1962
  %v1964 = vpop.f32.mrf.mxu0
  %1965 = vmatprep.mubr.f32.mxu0 0.0
  %1966 = vmatmul.mubr.f32.gmra.mxu0 %v1736
  %v1967 = vpop.f32.mrf.mxu0
  %v1968 = vadd.f32 %v1824, %v1967
  %v1969 = vpop.f32.mrf.mxu0
  %1970 = vmatprep.mubr.f32.mxu0 0.0
  %1971 = vmatmul.mubr.f32.gmra.mxu0 %v1737
  %v1972 = vpop.f32.mrf.mxu0
  %v1973 = vadd.f32 %v1829, %v1972
  %v1974 = vpop.f32.mrf.mxu0
  %1975 = vmatprep.mubr.f32.mxu0 0.0
  %1976 = vmatmul.mubr.f32.gmra.mxu0 %v1738
  %v1977 = vpop.f32.mrf.mxu0
  %v1978 = vadd.f32 %v1834, %v1977
  %v1979 = vpop.f32.mrf.mxu0
  %1980 = vdwg.mxu0
  %v1981 = vtanh.pop %v1903
  %v1982 = vtanh.pop %v1908
  %v1983 = vtanh.pop %v1913
  %v1984 = vtanh.pop %v1918
  %v1985 = vtanh.pop %v1923
  %v1986 = vtanh.pop %v1928
  %v1987 = vtanh.pop %v1933
  %v1988 = vtanh.pop %v1938
  %v1989 = vtanh.pop %v1943
  %v1990 = vtanh.pop %v1948
  %v1991 = vtanh.pop %v1953
  %v1992 = vtanh.pop %v1958
  %v1993 = vtanh.pop %v1963
  %v1994 = vtanh.pop %v1968
  %v1995 = vtanh.pop %v1973
  %v1996 = vtanh.pop %v1978
  %s1997 = scalar_lea.vmem %s3, 768
  %v1998 = vld [vmem:[%s1997] sm:$0xff]
  %v1999 = vld [vmem:[%s1997 + $0x8] sm:$0xff]
  %v2000 = vld [vmem:[%s1997 + $0x10] sm:$0xff]
  %v2001 = vld [vmem:[%s1997 + $0x18] sm:$0xff]
  %v2002 = vld [vmem:[%s1997 + $0x20] sm:$0xff]
  %v2003 = vld [vmem:[%s1997 + $0x28] sm:$0xff]
  %v2004 = vld [vmem:[%s1997 + $0x30] sm:$0xff]
  %v2005 = vld [vmem:[%s1997 + $0x38] sm:$0xff]
  %v2006 = vld [vmem:[%s1997 + $0x40] sm:$0xff]
  %v2007 = vld [vmem:[%s1997 + $0x48] sm:$0xff]
  %v2008 = vld [vmem:[%s1997 + $0x50] sm:$0xff]
  %v2009 = vld [vmem:[%s1997 + $0x58] sm:$0xff]
  %v2010 = vld [vmem:[%s1997 + $0x60] sm:$0xff]
  %v2011 = vld [vmem:[%s1997 + $0x68] sm:$0xff]
  %v2012 = vld [vmem:[%s1997 + $0x70] sm:$0xff]
  %v2013 = vld [vmem:[%s1997 + $0x78] sm:$0xff]
  %s2014 = scalar_lea.vmem %s4, 768
  %v2015 = vld [vmem:[%s2014] sm:$0xff]
  %v2016 = vld [vmem:[%s2014 + $0x8] sm:$0xff]
  %v2017 = vld [vmem:[%s2014 + $0x10] sm:$0xff]
  %v2018 = vld [vmem:[%s2014 + $0x18] sm:$0xff]
  %v2019 = vld [vmem:[%s2014 + $0x20] sm:$0xff]
  %v2020 = vld [vmem:[%s2014 + $0x28] sm:$0xff]
  %v2021 = vld [vmem:[%s2014 + $0x30] sm:$0xff]
  %v2022 = vld [vmem:[%s2014 + $0x38] sm:$0xff]
  %v2023 = vld [vmem:[%s2014 + $0x40] sm:$0xff]
  %v2024 = vld [vmem:[%s2014 + $0x48] sm:$0xff]
  %v2025 = vld [vmem:[%s2014 + $0x50] sm:$0xff]
  %v2026 = vld [vmem:[%s2014 + $0x58] sm:$0xff]
  %v2027 = vld [vmem:[%s2014 + $0x60] sm:$0xff]
  %v2028 = vld [vmem:[%s2014 + $0x68] sm:$0xff]
  %v2029 = vld [vmem:[%s2014 + $0x70] sm:$0xff]
  %v2030 = vld [vmem:[%s2014 + $0x78] sm:$0xff]
  %2032 = vset.pattern.permute.xlu0 0
  %2033 = vperm.xlu0 %2032, %v2015
  %v2034 = vpop.permute.xlu0 %2033
  %2037 = vset.pattern.permute.xlu0 0
  %2038 = vperm.xlu0 %2037, %v2016
  %v2039 = vpop.permute.xlu0 %2038
  %2042 = vset.pattern.permute.xlu0 0
  %2043 = vperm.xlu0 %2042, %v2017
  %v2044 = vpop.permute.xlu0 %2043
  %2047 = vset.pattern.permute.xlu0 0
  %2048 = vperm.xlu0 %2047, %v2018
  %v2049 = vpop.permute.xlu0 %2048
  %2052 = vset.pattern.permute.xlu0 0
  %2053 = vperm.xlu0 %2052, %v2019
  %v2054 = vpop.permute.xlu0 %2053
  %2057 = vset.pattern.permute.xlu0 0
  %2058 = vperm.xlu0 %2057, %v2020
  %v2059 = vpop.permute.xlu0 %2058
  %2062 = vset.pattern.permute.xlu0 0
  %2063 = vperm.xlu0 %2062, %v2021
  %v2064 = vpop.permute.xlu0 %2063
  %2067 = vset.pattern.permute.xlu0 0
  %2068 = vperm.xlu0 %2067, %v2022
  %v2069 = vpop.permute.xlu0 %2068
  %2072 = vset.pattern.permute.xlu0 0
  %2073 = vperm.xlu0 %2072, %v2023
  %v2074 = vpop.permute.xlu0 %2073
  %2077 = vset.pattern.permute.xlu0 0
  %2078 = vperm.xlu0 %2077, %v2024
  %v2079 = vpop.permute.xlu0 %2078
  %2082 = vset.pattern.permute.xlu0 0
  %2083 = vperm.xlu0 %2082, %v2025
  %v2084 = vpop.permute.xlu0 %2083
  %2087 = vset.pattern.permute.xlu0 0
  %2088 = vperm.xlu0 %2087, %v2026
  %v2089 = vpop.permute.xlu0 %2088
  %2092 = vset.pattern.permute.xlu0 0
  %2093 = vperm.xlu0 %2092, %v2027
  %v2094 = vpop.permute.xlu0 %2093
  %2097 = vset.pattern.permute.xlu0 0
  %2098 = vperm.xlu0 %2097, %v2028
  %v2099 = vpop.permute.xlu0 %2098
  %2102 = vset.pattern.permute.xlu0 0
  %2103 = vperm.xlu0 %2102, %v2029
  %v2104 = vpop.permute.xlu0 %2103
  %2107 = vset.pattern.permute.xlu0 0
  %2108 = vperm.xlu0 %2107, %v2030
  %v2109 = vpop.permute.xlu0 %2108
  %2111 = vmatprep.subr.mxu0 0.0
  %2112 = vmatpush1.msra.mxu0 %v1996
  %2113 = vmatprep.subr.mxu0 0.0
  %2114 = vmatpush1.msra.mxu0 %v1995
  %2115 = vmatprep.subr.mxu0 0.0
  %2116 = vmatpush1.msra.mxu0 %v1994
  %2117 = vmatprep.subr.mxu0 0.0
  %2118 = vmatpush1.msra.mxu0 %v1993
  %2119 = vmatprep.subr.mxu0 0.0
  %2120 = vmatpush1.msra.mxu0 %v1992
  %2121 = vmatprep.subr.mxu0 0.0
  %2122 = vmatpush1.msra.mxu0 %v1991
  %2123 = vmatprep.subr.mxu0 0.0
  %2124 = vmatpush1.msra.mxu0 %v1990
  %2125 = vmatprep.subr.mxu0 0.0
  %2126 = vmatpush1.msra.mxu0 %v1989
  %2127 = vmatprep.subr.mxu0 0.0
  %2128 = vmatpush1.msra.mxu0 %v1988
  %2129 = vmatprep.subr.mxu0 0.0
  %2130 = vmatpush1.msra.mxu0 %v1987
  %2131 = vmatprep.subr.mxu0 0.0
  %2132 = vmatpush1.msra.mxu0 %v1986
  %2133 = vmatprep.subr.mxu0 0.0
  %2134 = vmatpush1.msra.mxu0 %v1985
  %2135 = vmatprep.subr.mxu0 0.0
  %2136 = vmatpush1.msra.mxu0 %v1984
  %2137 = vmatprep.subr.mxu0 0.0
  %2138 = vmatpush1.msra.mxu0 %v1983
  %2139 = vmatprep.subr.mxu0 0.0
  %2140 = vmatpush1.msra.mxu0 %v1982
  %2141 = vmatprep.subr.mxu0 0.0
  %2142 = vmatpush1.msra.mxu0 %v1981
  %2143 = vmatprep.subr.mxu0 0.0
  %2144 = vmatpush2.msra.mxu0 0.0
  %2145 = vmatprep.subr.mxu0 0.0
  %2146 = vmatpush2.msra.mxu0 0.0
  %2147 = vmatprep.subr.mxu0 0.0
  %2148 = vmatpush2.msra.mxu0 0.0
  %2149 = vmatprep.subr.mxu0 0.0
  %2150 = vmatpush2.msra.mxu0 0.0
  %2151 = vmatprep.subr.mxu0 0.0
  %2152 = vmatpush2.msra.mxu0 0.0
  %2153 = vmatprep.subr.mxu0 0.0
  %2154 = vmatpush2.msra.mxu0 0.0
  %2155 = vmatprep.subr.mxu0 0.0
  %2156 = vmatpush2.msra.mxu0 0.0
  %2157 = vmatprep.subr.mxu0 0.0
  %2158 = vmatpush2.msra.mxu0 0.0
  %2159 = vmatprep.subr.mxu0 0.0
  %2160 = vmatpush2.msra.mxu0 0.0
  %2161 = vmatprep.subr.mxu0 0.0
  %2162 = vmatpush2.msra.mxu0 0.0
  %2163 = vmatprep.subr.mxu0 0.0
  %2164 = vmatpush2.msra.mxu0 0.0
  %2165 = vmatprep.subr.mxu0 0.0
  %2166 = vmatpush2.msra.mxu0 0.0
  %2167 = vmatprep.subr.mxu0 0.0
  %2168 = vmatpush2.msra.mxu0 0.0
  %2169 = vmatprep.subr.mxu0 0.0
  %2170 = vmatpush2.msra.mxu0 0.0
  %2171 = vmatprep.subr.mxu0 0.0
  %2172 = vmatpush2.msra.mxu0 0.0
  %2173 = vmatprep.subr.mxu0 0.0
  %2174 = vmatpush2.msra.mxu0 0.0
  %2175 = vmatprep.mubr.f32.mxu0 0.0
  %2176 = vmatmul.mubr.f32.gmra.mxu0 %v1998
  %v2177 = vpop.f32.mrf.mxu0
  %v2178 = vadd.f32 %v2034, %v2177
  %v2179 = vpop.f32.mrf.mxu0
  %2180 = vmatprep.mubr.f32.mxu0 0.0
  %2181 = vmatmul.mubr.f32.gmra.mxu0 %v1999
  %v2182 = vpop.f32.mrf.mxu0
  %v2183 = vadd.f32 %v2039, %v2182
  %v2184 = vpop.f32.mrf.mxu0
  %2185 = vmatprep.mubr.f32.mxu0 0.0
  %2186 = vmatmul.mubr.f32.gmra.mxu0 %v2000
  %v2187 = vpop.f32.mrf.mxu0
  %v2188 = vadd.f32 %v2044, %v2187
  %v2189 = vpop.f32.mrf.mxu0
  %2190 = vmatprep.mubr.f32.mxu0 0.0
  %2191 = vmatmul.mubr.f32.gmra.mxu0 %v2001
  %v2192 = vpop.f32.mrf.mxu0
  %v2193 = vadd.f32 %v2049, %v2192
  %v2194 = vpop.f32.mrf.mxu0
  %2195 = vmatprep.mubr.f32.mxu0 0.0
  %2196 = vmatmul.mubr.f32.gmra.mxu0 %v2002
  %v2197 = vpop.f32.mrf.mxu0
  %v2198 = vadd.f32 %v2054, %v2197
  %v2199 = vpop.f32.mrf.mxu0
  %2200 = vmatprep.mubr.f32.mxu0 0.0
  %2201 = vmatmul.mubr.f32.gmra.mxu0 %v2003
  %v2202 = vpop.f32.mrf.mxu0
  %v2203 = vadd.f32 %v2059, %v2202
  %v2204 = vpop.f32.mrf.mxu0
  %2205 = vmatprep.mubr.f32.mxu0 0.0
  %2206 = vmatmul.mubr.f32.gmra.mxu0 %v2004
  %v2207 = vpop.f32.mrf.mxu0
  %v2208 = vadd.f32 %v2064, %v2207
  %v2209 = vpop.f32.mrf.mxu0
  %2210 = vmatprep.mubr.f32.mxu0 0.0
  %2211 = vmatmul.mubr.f32.gmra.mxu0 %v2005
  %v2212 = vpop.f32.mrf.mxu0
  %v2213 = vadd.f32 %v2069, %v2212
  %v2214 = vpop.f32.mrf.mxu0
  %2215 = vmatprep.mubr.f32.mxu0 0.0
  %2216 = vmatmul.mubr.f32.gmra.mxu0 %v2006
  %v2217 = vpop.f32.mrf.mxu0
  %v2218 = vadd.f32 %v2074, %v2217
  %v2219 = vpop.f32.mrf.mxu0
  %2220 = vmatprep.mubr.f32.mxu0 0.0
  %2221 = vmatmul.mubr.f32.gmra.mxu0 %v2007
  %v2222 = vpop.f32.mrf.mxu0
  %v2223 = vadd.f32 %v2079, %v2222
  %v2224 = vpop.f32.mrf.mxu0
  %2225 = vmatprep.mubr.f32.mxu0 0.0
  %2226 = vmatmul.mubr.f32.gmra.mxu0 %v2008
  %v2227 = vpop.f32.mrf.mxu0
  %v2228 = vadd.f32 %v2084, %v2227
  %v2229 = vpop.f32.mrf.mxu0
  %2230 = vmatprep.mubr.f32.mxu0 0.0
  %2231 = vmatmul.mubr.f32.gmra.mxu0 %v2009
  %v2232 = vpop.f32.mrf.mxu0
  %v2233 = vadd.f32 %v2089, %v2232
  %v2234 = vpop.f32.mrf.mxu0
  %2235 = vmatprep.mubr.f32.mxu0 0.0
  %2236 = vmatmul.mubr.f32.gmra.mxu0 %v2010
  %v2237 = vpop.f32.mrf.mxu0
  %v2238 = vadd.f32 %v2094, %v2237
  %v2239 = vpop.f32.mrf.mxu0
  %2240 = vmatprep.mubr.f32.mxu0 0.0
  %2241 = vmatmul.mubr.f32.gmra.mxu0 %v2011
  %v2242 = vpop.f32.mrf.mxu0
  %v2243 = vadd.f32 %v2099, %v2242
  %v2244 = vpop.f32.mrf.mxu0
  %2245 = vmatprep.mubr.f32.mxu0 0.0
  %2246 = vmatmul.mubr.f32.gmra.mxu0 %v2012
  %v2247 = vpop.f32.mrf.mxu0
  %v2248 = vadd.f32 %v2104, %v2247
  %v2249 = vpop.f32.mrf.mxu0
  %2250 = vmatprep.mubr.f32.mxu0 0.0
  %2251 = vmatmul.mubr.f32.gmra.mxu0 %v2013
  %v2252 = vpop.f32.mrf.mxu0
  %v2253 = vadd.f32 %v2109, %v2252
  %v2254 = vpop.f32.mrf.mxu0
  %2255 = vdwg.mxu0
  %v2256 = vtanh.pop %v2178
  %v2257 = vtanh.pop %v2183
  %v2258 = vtanh.pop %v2188
  %v2259 = vtanh.pop %v2193
  %v2260 = vtanh.pop %v2198
  %v2261 = vtanh.pop %v2203
  %v2262 = vtanh.pop %v2208
  %v2263 = vtanh.pop %v2213
  %v2264 = vtanh.pop %v2218
  %v2265 = vtanh.pop %v2223
  %v2266 = vtanh.pop %v2228
  %v2267 = vtanh.pop %v2233
  %v2268 = vtanh.pop %v2238
  %v2269 = vtanh.pop %v2243
  %v2270 = vtanh.pop %v2248
  %v2271 = vtanh.pop %v2253
  %v2272 = vld [vmem:[%s5] sm:$0xff]
  %v2273 = vld [vmem:[%s6] sm:$0xff]
  %2275 = vset.pattern.permute.xlu0 0
  %2276 = vperm.xlu0 %2275, %v2273
  %v2277 = vpop.permute.xlu0 %2276
  %2279 = vmatprep.subr.mxu0 0.0
  %2280 = vmatpush1.msra.mxu0 %v2271
  %2281 = vmatprep.subr.mxu0 0.0
  %2282 = vmatpush1.msra.mxu0 %v2270
  %2283 = vmatprep.subr.mxu0 0.0
  %2284 = vmatpush1.msra.mxu0 %v2269
  %2285 = vmatprep.subr.mxu0 0.0
  %2286 = vmatpush1.msra.mxu0 %v2268
  %2287 = vmatprep.subr.mxu0 0.0
  %2288 = vmatpush1.msra.mxu0 %v2267
  %2289 = vmatprep.subr.mxu0 0.0
  %2290 = vmatpush1.msra.mxu0 %v2266
  %2291 = vmatprep.subr.mxu0 0.0
  %2292 = vmatpush1.msra.mxu0 %v2265
  %2293 = vmatprep.subr.mxu0 0.0
  %2294 = vmatpush1.msra.mxu0 %v2264
  %2295 = vmatprep.subr.mxu0 0.0
  %2296 = vmatpush1.msra.mxu0 %v2263
  %2297 = vmatprep.subr.mxu0 0.0
  %2298 = vmatpush1.msra.mxu0 %v2262
  %2299 = vmatprep.subr.mxu0 0.0
  %2300 = vmatpush1.msra.mxu0 %v2261
  %2301 = vmatprep.subr.mxu0 0.0
  %2302 = vmatpush1.msra.mxu0 %v2260
  %2303 = vmatprep.subr.mxu0 0.0
  %2304 = vmatpush1.msra.mxu0 %v2259
  %2305 = vmatprep.subr.mxu0 0.0
  %2306 = vmatpush1.msra.mxu0 %v2258
  %2307 = vmatprep.subr.mxu0 0.0
  %2308 = vmatpush1.msra.mxu0 %v2257
  %2309 = vmatprep.subr.mxu0 0.0
  %2310 = vmatpush1.msra.mxu0 %v2256
  %2311 = vmatprep.subr.mxu0 0.0
  %2312 = vmatpush2.msra.mxu0 0.0
  %2313 = vmatprep.subr.mxu0 0.0
  %2314 = vmatpush2.msra.mxu0 0.0
  %2315 = vmatprep.subr.mxu0 0.0
  %2316 = vmatpush2.msra.mxu0 0.0
  %2317 = vmatprep.subr.mxu0 0.0
  %2318 = vmatpush2.msra.mxu0 0.0
  %2319 = vmatprep.subr.mxu0 0.0
  %2320 = vmatpush2.msra.mxu0 0.0
  %2321 = vmatprep.subr.mxu0 0.0
  %2322 = vmatpush2.msra.mxu0 0.0
  %2323 = vmatprep.subr.mxu0 0.0
  %2324 = vmatpush2.msra.mxu0 0.0
  %2325 = vmatprep.subr.mxu0 0.0
  %2326 = vmatpush2.msra.mxu0 0.0
  %2327 = vmatprep.subr.mxu0 0.0
  %2328 = vmatpush2.msra.mxu0 0.0
  %2329 = vmatprep.subr.mxu0 0.0
  %2330 = vmatpush2.msra.mxu0 0.0
  %2331 = vmatprep.subr.mxu0 0.0
  %2332 = vmatpush2.msra.mxu0 0.0
  %2333 = vmatprep.subr.mxu0 0.0
  %2334 = vmatpush2.msra.mxu0 0.0
  %2335 = vmatprep.subr.mxu0 0.0
  %2336 = vmatpush2.msra.mxu0 0.0
  %2337 = vmatprep.subr.mxu0 0.0
  %2338 = vmatpush2.msra.mxu0 0.0
  %2339 = vmatprep.subr.mxu0 0.0
  %2340 = vmatpush2.msra.mxu0 0.0
  %2341 = vmatprep.subr.mxu0 0.0
  %2342 = vmatpush2.msra.mxu0 0.0
  %2343 = vmatprep.mubr.f32.mxu0 0.0
  %2344 = vmatmul.mubr.f32.gmra.mxu0 %v2272
  %v2345 = vpop.f32.mrf.mxu0
  %v2346 = vadd.f32 %v2277, %v2345
  %v2347 = vpop.f32.mrf.mxu0
  %2348 = vdwg.mxu0
  %2349 = vst [vmem:[%s7] sm:$0xff] %v2346
  // Predicated region
  $region30: #{ann_uv_forward.1} parent=0 // pred_check
    _
  $region31: #{ann_uv_forward.1} parent=0 // pred_check_branch
    %2351 = sbr.rel (0) target = $region33
  $region32: #{ann_uv_forward.1} parent=0 // pred_region
    _
  $region33: #{ann_uv_forward.1} parent=0 // pred_fallthru
    _
  // Predicated region
  $region34: #{ann_uv_forward.1} parent=0 // pred_check
    _
  $region35: #{ann_uv_forward.1} parent=0 // pred_check_branch
    %2353 = sbr.rel (0) target = $region37
  $region36: #{ann_uv_forward.1} parent=0 // pred_region
    _
  $region37: #{ann_uv_forward.1} parent=0 // pred_fallthru
    _

</llo_original>
